<compile_context>
chip_gen: v5e
topology: v5e:2x2
jax: 0.10.0
libtpu: 0.0.40
codegen_flags: <defaults>
</compile_context>

<pallas_src>
import functools

import jax
import jax.numpy as jnp
import numpy as np
from jax.experimental import pallas as pl
from jax.experimental.pallas import tpu as pltpu


# ---------------------------------------------------------------------------
# In-kernel helpers
# ---------------------------------------------------------------------------
def _bin_index(x, bins):
    """torch.histc-style bin index: floor(x*bins) in [0, bins-1]; -1 if x outside [0,1]."""
    valid = jnp.logical_and(x >= 0.0, x <= 1.0)
    q = jnp.clip(jnp.floor(x * bins), 0.0, float(bins - 1))
    return jnp.where(valid, q, -1.0)


def _chunk_histogram(x_ref, *, bins, rows):
    """Histogram of the (rows, 128) f32 block behind `x_ref`.

    One-hot rows are built in bf16 and reduced on the MXU via `onehot @ ones`,
    so only compare+select stay on the VALU (no per-bin tree reductions).
    Returns (bins, 8) f32 counts (all 8 columns identical).
    """
    cmp_dtype = jnp.bfloat16 if bins <= 256 else jnp.float32  # bf16 ints exact to 256
    biota = (jax.lax.broadcasted_iota(jnp.int32, (bins, 128), 0)
             .astype(jnp.float32).astype(cmp_dtype))
    ones_mat = jnp.ones((128, 8), jnp.bfloat16)

    def rows_hist(idx_cmp, nrows, acc):            # idx_cmp: (nrows, 128); static nrows
        for j in range(nrows):                     # static unroll within one sublane tile
            oh = (biota == idx_cmp[j:j + 1, :]).astype(jnp.bfloat16)   # (bins, 128)
            acc = acc + jnp.dot(oh, ones_mat, preferred_element_type=jnp.float32)
        return acc

    def group(base, nrows, acc):
        xg = x_ref[pl.ds(base, nrows), :]
        return rows_hist(_bin_index(xg, bins).astype(cmp_dtype), nrows, acc)

    n_groups, rem = rows // 8, rows % 8
    acc = jnp.zeros((bins, 8), jnp.float32)
    if n_groups > 0:
        acc = jax.lax.fori_loop(
            0, n_groups, lambda g, a: group(pl.multiple_of(g * 8, 8), 8, a), acc)
    if rem > 0:
        acc = group(n_groups * 8, rem, acc)
    return acc


def _value_from_hist_row(hist_row, *, bins, height_rate):
    """Per-image `value` (torch argmax/argmin semantics) from the (1, bins) histogram."""
    biota = jax.lax.broadcasted_iota(jnp.int32, (1, bins), 1)
    hmax = jnp.max(hist_row, axis=1, keepdims=True)
    comp_height = hmax * height_rate
    comp_bin = jnp.min(jnp.where(hist_row == hmax, biota, bins), axis=1, keepdims=True)
    mask = jnp.logical_or(biota < comp_bin, hist_row > comp_height)
    first_false = jnp.min(jnp.where(mask, bins, biota), axis=1, keepdims=True)
    val_idx = jnp.where(first_false >= bins, 0, first_false)       # all-True -> index 0
    return val_idx.astype(jnp.float32) / bins                      # (1, 1)


# ---------------------------------------------------------------------------
# Kernels
# ---------------------------------------------------------------------------
def _rescaler_kernel(x_ref, w1_ref, b1_ref, w2_ref, b2_ref, w3_ref, b3_ref,
                     w4_ref, b4_ref, out_ref, value_ref, hist_ref, scale_ref, *,
                     bins, height_rate, rows):
    p = pl.program_id(1)                    # 0: histogram pass, 1: rescale pass
    c = pl.program_id(2)                    # row-chunk index
    last_c = pl.num_programs(2) - 1

    # -------- phase 0: accumulate histogram; at last chunk compute value+scale
    @pl.when(p == 0)
    def _phase0():
        @pl.when(c == 0)
        def _init():
            hist_ref[...] = jnp.zeros_like(hist_ref)

        hist_ref[...] += _chunk_histogram(x_ref, bins=bins, rows=rows)

        @pl.when(c == last_c)
        def _finalize():
            hist8 = jnp.transpose(hist_ref[...])           # (8, bins), identical rows
            hist_row = hist8[0:1, :]                       # (1, bins)
            value_ref[...] = jnp.broadcast_to(
                _value_from_hist_row(hist_row, bins=bins, height_rate=height_rate),
                value_ref.shape)
            # 4-layer MLP on the MXU (tiny; uses the 8 identical sublane rows).
            h = jnp.maximum(jnp.dot(hist8, w1_ref[...],
                                    preferred_element_type=jnp.float32) + b1_ref[...], 0.0)
            h = jnp.maximum(jnp.dot(h, w2_ref[...],
                                    preferred_element_type=jnp.float32) + b2_ref[...], 0.0)
            h = jnp.maximum(jnp.dot(h, w3_ref[...],
                                    preferred_element_type=jnp.float32) + b3_ref[...], 0.0)
            w = jnp.sum(h * w4_ref[...], axis=1, keepdims=True) + b4_ref[...]   # (8, 1)
            scale_ref[...] = jnp.broadcast_to(w[0:1, 0:1], scale_ref.shape)

    # -------- phase 1: stream the chunk back out, multiplied by the scale ----
    @pl.when(p == 1)
    def _phase1():
        s = scale_ref[...]                                 # (8, 128) splatted scale
        n_groups, rem = rows // 8, rows % 8

        def body(g, carry):
            base = pl.multiple_of(g * 8, 8)
            out_ref[pl.ds(base, 8), :] = x_ref[pl.ds(base, 8), :] * s
            return carry

        if n_groups > 0:
            jax.lax.fori_loop(0, n_groups, body, 0)
        if rem > 0:
            base = n_groups * 8
            out_ref[pl.ds(base, rem), :] = x_ref[pl.ds(base, rem), :] * s[:rem, :]


def _hist_value_kernel(x_ref, value_ref, hist_ref, *, bins, height_rate, rows):
    """do_rescale=False path: histogram + value only (no pass-through copy of x)."""
    c = pl.program_id(1)

    @pl.when(c == 0)
    def _init():
        hist_ref[...] = jnp.zeros_like(hist_ref)

    hist_ref[...] += _chunk_histogram(x_ref, bins=bins, rows=rows)

    @pl.when(c == pl.num_programs(1) - 1)
    def _finalize():
        hist_row = jnp.transpose(hist_ref[...])[0:1, :]
        value_ref[...] = jnp.broadcast_to(
            _value_from_hist_row(hist_row, bins=bins, height_rate=height_rate),
            value_ref.shape)


# ---------------------------------------------------------------------------
# Wrapper
# ---------------------------------------------------------------------------
def _choose_chunk_rows(n_rows, target=512):
    """Largest chunk <= target rows that divides n_rows (>= 256 KiB DMA when possible)."""
    if n_rows <= target:
        return n_rows
    for tr in (512, 384, 256, 192, 128, 96, 64, 32, 16, 8):
        if tr <= target and n_rows % tr == 0:
            return tr
    return n_rows   # TODO(synk): pad awkward row counts instead of one giant chunk.


def rescaler_forward(x_nchw, params, *, bins, height_rate, do_rescale=True):
    N, C, H, W = x_nchw.shape
    S = C * H * W
    if S % 128 != 0:
        # TODO(synk): pad the flattened image to a lane multiple for odd sizes.
        raise ValueError("C*H*W must be a multiple of 128 for the lane-dense layout")
    R = S // 128
    TR = _choose_chunk_rows(R)
    n_chunks = R // TR
    x_flat = x_nchw.reshape(N, R, 128).astype(jnp.float32)

    block_bytes = TR * 128 * 4
    vmem_limit = int(min(100 * 2**20, max(32 * 2**20, 8 * block_bytes)))

    if not do_rescale:
        value_lanes = pl.pallas_call(
            functools.partial(_hist_value_kernel, bins=bins,
                              height_rate=height_rate, rows=TR),
            out_shape=jax.ShapeDtypeStruct((N, 1, 128), jnp.float32),
            grid=(N, n_chunks),
            in_specs=[pl.BlockSpec((None, TR, 128), lambda n, c: (n, c, 0))],
            out_specs=pl.BlockSpec((None, 1, 128), lambda n, c: (n, 0, 0)),
            scratch_shapes=[pltpu.VMEM((bins, 8), jnp.float32)],
            compiler_params=pltpu.CompilerParams(
                dimension_semantics=("parallel", "arbitrary"),
                vmem_limit_bytes=vmem_limit),
        )(x_flat)
        return x_nchw, value_lanes[:, 0, 0]

    (w1, b1), (w2, b2), (w3, b3), (w4, b4) = params
    d1, d2, d3 = w1.shape[1], w2.shape[1], w3.shape[1]
    b1r, b2r, b3r = b1.reshape(1, d1), b2.reshape(1, d2), b3.reshape(1, d3)
    w4r, b4r = w4.reshape(1, d3), b4.reshape(1, 1)

    mlp_flops = 2 * (bins * d1 + d1 * d2 + d2 * d3 + d3)
    flops = int(N * (3 * S * bins + 2 * S + mlp_flops))
    bytes_accessed = int(4 * (3 * N * S + N * 128) +
                         4 * (bins * d1 + d1 * d2 + d2 * d3 + d3 + d1 + d2 + d3 + 1))

    kernel = functools.partial(_rescaler_kernel, bins=bins,
                               height_rate=height_rate, rows=TR)

    out_flat, value_lanes = pl.pallas_call(
        kernel,
        out_shape=[
            jax.ShapeDtypeStruct((N, R, 128), jnp.float32),   # rescaled x
            jax.ShapeDtypeStruct((N, 1, 128), jnp.float32),   # value (lane-broadcast)
        ],
        grid=(N, 2, n_chunks),
        in_specs=[
            pl.BlockSpec((None, TR, 128), lambda n, p, c: (n, c, 0)),   # x chunk
            pl.BlockSpec((bins, d1), lambda n, p, c: (0, 0)),           # W1
            pl.BlockSpec((1, d1), lambda n, p, c: (0, 0)),              # b1
            pl.BlockSpec((d1, d2), lambda n, p, c: (0, 0)),             # W2
            pl.BlockSpec((1, d2), lambda n, p, c: (0, 0)),              # b2
            pl.BlockSpec((d2, d3), lambda n, p, c: (0, 0)),             # W3
            pl.BlockSpec((1, d3), lambda n, p, c: (0, 0)),              # b3
            pl.BlockSpec((1, d3), lambda n, p, c: (0, 0)),              # W4 (row)
            pl.BlockSpec((1, 1), lambda n, p, c: (0, 0)),               # b4
        ],
        out_specs=[
            # Phase 0 (p==0) parks on block (n, 0, 0) and never stores, so no HBM
            # writeback happens until phase 1 fills each chunk with x * scale.
            pl.BlockSpec((None, TR, 128), lambda n, p, c: (n, c * p, 0)),
            pl.BlockSpec((None, 1, 128), lambda n, p, c: (n, 0, 0)),
        ],
        scratch_shapes=[
            pltpu.VMEM((bins, 8), jnp.float32),    # histogram accumulator
            pltpu.VMEM((8, 128), jnp.float32),     # per-image MLP scale (splatted)
        ],
        compiler_params=pltpu.CompilerParams(
            dimension_semantics=("parallel", "arbitrary", "arbitrary"),
            vmem_limit_bytes=vmem_limit),
        cost_estimate=pl.CostEstimate(flops=flops, transcendentals=0,
                                      bytes_accessed=bytes_accessed),
    )(x_flat, w1, b1r, w2, b2r, w3, b3r, w4r, b4r)

    out = out_flat.reshape(N, C, H, W)
    value = value_lanes[:, 0, 0]
    return out, value


# ---------------------------------------------------------------------------
# Parameter init (deterministic, synthetic) + pure-JAX reference
# ---------------------------------------------------------------------------
def init_params(key, bins):
    dims = [bins, 32, 64, 128, 1]
    params = []
    for i in range(4):
        key, kw, kb = jax.random.split(key, 3)
        w = jax.random.normal(kw, (dims[i], dims[i + 1]), jnp.float32) / np.sqrt(dims[i])
        b = 0.01 * jax.random.normal(kb, (dims[i + 1],), jnp.float32)
        params.append((w, b))
    return params


def rescaler_reference(x, params, bins, height_rate, do_rescale):
    N = x.shape[0]
    xf = x.reshape(N, -1)
    valid = (xf >= 0.0) & (xf <= 1.0)
    idx = jnp.clip(jnp.floor(xf * bins).astype(jnp.int32), 0, bins - 1)
    idx = jnp.where(valid, idx, -1)
    onehot = idx[:, :, None] == jnp.arange(bins)[None, None, :]
    hist = jnp.sum(onehot.astype(jnp.float32), axis=1)                      # (N, B)
    hmax = jnp.max(hist, axis=1, keepdims=True)
    comp_height = hmax * height_rate
    comp_bin = jnp.argmax(hist, axis=1, keepdims=True)
    ar = jnp.arange(bins)[None, :]
    mask = (ar < comp_bin) | (hist > comp_height)
    value = jnp.argmin(mask.astype(jnp.float32), axis=1).astype(jnp.float32) / bins
    if not do_rescale:
        return x, value
    (w1, b1), (w2, b2), (w3, b3), (w4, b4) = params
    hp = jax.lax.Precision.HIGHEST
    h = jax.nn.relu(jnp.dot(hist, w1, precision=hp) + b1)
    h = jax.nn.relu(jnp.dot(h, w2, precision=hp) + b2)
    h = jax.nn.relu(jnp.dot(h, w3, precision=hp) + b3)
    w = jnp.dot(h, w4, precision=hp) + b4                                   # (N, 1)
    out = x * w[:, :, None, None]
    return out, value


if __name__ == "__main__":
    key = jax.random.PRNGKey(0)
    key, kx, kp, kx2 = jax.random.split(key, 4)
    bins, height_rate = 64, 0.5

    # x in [0, 1) — consistent with histc(min=0, max=1) on normalized images.
    x = jax.random.uniform(kx, (2, 4, 16, 16), dtype=jnp.float32)
    params = init_params(kp, bins)

    out, value = rescaler_forward(x, params, bins=bins,
                                  height_rate=height_rate, do_rescale=True)
    out = jax.block_until_ready(out)
    value = jax.block_until_ready(value)

    out_ref, value_ref = rescaler_reference(x, params, bins, height_rate, True)
    assert out.shape == x.shape, out.shape
    assert value.shape == (x.shape[0],), value.shape
    assert bool(jnp.all(jnp.isfinite(out)))
    np.testing.assert_allclose(np.asarray(value), np.asarray(value_ref), atol=1e-6)
    np.testing.assert_allclose(np.asarray(out), np.asarray(out_ref), rtol=5e-3, atol=5e-3)

    # Larger multi-chunk case: R = 1024 rows -> TR = 512, 2 chunks, N = 1.
    x2 = jax.random.uniform(kx2, (1, 16, 64, 128), dtype=jnp.float32)
    out2, value2 = rescaler_forward(x2, params, bins=bins,
                                    height_rate=height_rate, do_rescale=True)
    out2 = jax.block_until_ready(out2)
    out2_ref, value2_ref = rescaler_reference(x2, params, bins, height_rate, True)
    np.testing.assert_allclose(np.asarray(value2), np.asarray(value2_ref), atol=1e-6)
    np.testing.assert_allclose(np.asarray(out2), np.asarray(out2_ref), rtol=2e-2, atol=1e-3)

    # do_rescale=False path: value only, x passed through untouched.
    x3_out, value3 = rescaler_forward(x, params, bins=bins,
                                      height_rate=height_rate, do_rescale=False)
    value3 = jax.block_until_ready(value3)
    _, value3_ref = rescaler_reference(x, params, bins, height_rate, False)
    assert x3_out.shape == x.shape
    np.testing.assert_allclose(np.asarray(value3), np.asarray(value3_ref), atol=1e-6)

    print("KERNEL_OK")
</pallas_src>

<mosaic_0001>
module attributes {stable_mosaic.version = 11 : i64} {
  func.func @_rescaler_kernel(%arg0: i32, %arg1: i32, %arg2: i32, %arg3: memref<1x8x128xf32, #tpu.memory_space<vmem>>, %arg4: memref<64x32xf32, #tpu.memory_space<vmem>>, %arg5: memref<1x32xf32, #tpu.memory_space<vmem>>, %arg6: memref<32x64xf32, #tpu.memory_space<vmem>>, %arg7: memref<1x64xf32, #tpu.memory_space<vmem>>, %arg8: memref<64x128xf32, #tpu.memory_space<vmem>>, %arg9: memref<1x128xf32, #tpu.memory_space<vmem>>, %arg10: memref<1x128xf32, #tpu.memory_space<vmem>>, %arg11: memref<1x1xf32, #tpu.memory_space<vmem>>, %arg12: memref<1x8x128xf32, #tpu.memory_space<vmem>>, %arg13: memref<1x1x128xf32, #tpu.memory_space<vmem>>, %arg14: memref<64x8xf32, #tpu.memory_space<vmem>>, %arg15: memref<8x128xf32, #tpu.memory_space<vmem>>) attributes {dimension_semantics = [#tpu.dimension_semantics<parallel>, #tpu.dimension_semantics<arbitrary>, #tpu.dimension_semantics<arbitrary>], iteration_bounds = array<i64: 2, 2, 1>, scalar_prefetch = 0 : i64, scratch_operands = 2 : i64, tpu.core_type = #tpu.core_type<tc>, window_params = [{transform_indices = @transform_0, window_bounds = array<i64: 1, 8, 128>}, {pipeline_mode = #tpu.pipeline_mode<synchronous>, transform_indices = @transform_1, window_bounds = array<i64: 64, 32>}, {pipeline_mode = #tpu.pipeline_mode<synchronous>, transform_indices = @transform_2, window_bounds = array<i64: 1, 32>}, {pipeline_mode = #tpu.pipeline_mode<synchronous>, transform_indices = @transform_3, window_bounds = array<i64: 32, 64>}, {pipeline_mode = #tpu.pipeline_mode<synchronous>, transform_indices = @transform_4, window_bounds = array<i64: 1, 64>}, {pipeline_mode = #tpu.pipeline_mode<synchronous>, transform_indices = @transform_5, window_bounds = array<i64: 64, 128>}, {pipeline_mode = #tpu.pipeline_mode<synchronous>, transform_indices = @transform_6, window_bounds = array<i64: 1, 128>}, {pipeline_mode = #tpu.pipeline_mode<synchronous>, transform_indices = @transform_7, window_bounds = array<i64: 1, 128>}, {pipeline_mode = #tpu.pipeline_mode<synchronous>, transform_indices = @transform_8, window_bounds = array<i64: 1, 1>}, {transform_indices = @transform_9, window_bounds = array<i64: 1, 8, 128>}, {transform_indices = @transform_10, window_bounds = array<i64: 1, 1, 128>}]} {
    %c0_i32 = arith.constant 0 : i32
    %0 = arith.cmpi eq, %arg1, %c0_i32 : i32
    %1 = arith.extui %0 : i1 to i32
    %c0_i32_0 = arith.constant 0 : i32
    %2 = arith.cmpi ne, %1, %c0_i32_0 : i32
    scf.if %2 {
      %c0_i32_2 = arith.constant 0 : i32
      %6 = arith.cmpi eq, %arg2, %c0_i32_2 : i32
      %7 = arith.extui %6 : i1 to i32
      %c0_i32_3 = arith.constant 0 : i32
      %8 = arith.cmpi ne, %7, %c0_i32_3 : i32
      scf.if %8 {
        %cst_28 = arith.constant 0.000000e+00 : f32
        %104 = vector.broadcast %cst_28 : f32 to vector<64x8xf32>
        %c0_29 = arith.constant 0 : index
        %c0_30 = arith.constant 0 : index
        %105 = vector.load %arg14[%c0_29, %c0_30] : memref<64x8xf32, #tpu.memory_space<vmem>>, vector<64x8xf32>
        tpu.vector_store %arg14[%c0_29, %c0_30], %104 {strides = array<i32>} : memref<64x8xf32, #tpu.memory_space<vmem>>, vector<64x8xf32>,
      } else {
      }
      %c0 = arith.constant 0 : index
      %c0_4 = arith.constant 0 : index
      %9 = vector.load %arg14[%c0, %c0_4] : memref<64x8xf32, #tpu.memory_space<vmem>>, vector<64x8xf32>
      %10 = tpu.iota {dimensions = array<i32: 0>} : vector<64x128xi32>
      %11 = arith.sitofp %10 : vector<64x128xi32> to vector<64x128xf32>
      %12 = arith.truncf %11 : vector<64x128xf32> to vector<64x128xbf16>
      %cst = arith.constant 1.000000e+00 : bf16
      %13 = vector.broadcast %cst : bf16 to vector<128x8xbf16>
      %cst_5 = arith.constant 0.000000e+00 : f32
      %14 = vector.broadcast %cst_5 : f32 to vector<64x8xf32>
      %c0_i32_6 = arith.constant 0 : i32
      %c8_i32 = arith.constant 8 : i32
      %15 = arith.muli %c0_i32_6, %c8_i32 : i32
      %16 = tpu.assume_multiple %15, 8 : i32
      %c0_7 = arith.constant 0 : index
      %17 = arith.index_cast %16 : i32 to index
      %c0_8 = arith.constant 0 : index
      %18 = vector.load %arg3[%c0_7, %17, %c0_8] : memref<1x8x128xf32, #tpu.memory_space<vmem>>, vector<1x8x128xf32>
      %19 = vector.shape_cast %18 : vector<1x8x128xf32> to vector<8x128xf32>
      %cst_9 = arith.constant 0.000000e+00 : f32
      %20 = vector.broadcast %cst_9 : f32 to vector<8x128xf32>
      %21 = arith.cmpf oge, %19, %20 : vector<8x128xf32>
      %cst_10 = arith.constant 1.000000e+00 : f32
      %22 = vector.broadcast %cst_10 : f32 to vector<8x128xf32>
      %23 = arith.cmpf ole, %19, %22 : vector<8x128xf32>
      %24 = arith.andi %21, %23 : vector<8x128xi1>
      %cst_11 = arith.constant 6.400000e+01 : f32
      %25 = vector.broadcast %cst_11 : f32 to vector<8x128xf32>
      %26 = arith.mulf %19, %25 : vector<8x128xf32>
      %27 = math.floor %26 : vector<8x128xf32>
      %cst_12 = arith.constant 0.000000e+00 : f32
      %cst_13 = arith.constant 6.300000e+01 : f32
      %28 = vector.broadcast %cst_12 : f32 to vector<8x128xf32>
      %29 = arith.maximumf %28, %27 : vector<8x128xf32>
      %30 = vector.broadcast %cst_13 : f32 to vector<8x128xf32>
      %31 = arith.minimumf %30, %29 : vector<8x128xf32>
      %cst_14 = arith.constant -1.000000e+00 : f32
      %32 = vector.broadcast %cst_14 : f32 to vector<8x128xf32>
      %33 = arith.select %24, %31, %32 : vector<8x128xi1>, vector<8x128xf32>
      %34 = arith.truncf %33 : vector<8x128xf32> to vector<8x128xbf16>
      %35 = vector.extract_strided_slice %34 {offsets = [0, 0], sizes = [1, 128], strides = [1, 1]} : vector<8x128xbf16> to vector<1x128xbf16>
      %36 = vector.broadcast %35 : vector<1x128xbf16> to vector<64x128xbf16>
      %37 = arith.cmpf oeq, %12, %36 : vector<64x128xbf16>
      %38 = arith.extui %37 : vector<64x128xi1> to vector<64x128xi32>
      %39 = arith.sitofp %38 : vector<64x128xi32> to vector<64x128xf32>
      %40 = arith.truncf %39 : vector<64x128xf32> to vector<64x128xbf16>
      %cst_15 = arith.constant dense<0.000000e+00> : vector<64x8xf32>
      %41 = tpu.matmul %40, %13, %cst_15 {dimension_numbers = #tpu.dot_dimension_numbers<[1], [0], [0], [1], [0, 0, 1, 1], [], []>} : vector<64x128xbf16>, vector<128x8xbf16>, vector<64x8xf32> -> vector<64x8xf32>
      %42 = arith.addf %14, %41 : vector<64x8xf32>
      %43 = vector.extract_strided_slice %34 {offsets = [1, 0], sizes = [1, 128], strides = [1, 1]} : vector<8x128xbf16> to vector<1x128xbf16>
      %44 = vector.broadcast %43 : vector<1x128xbf16> to vector<64x128xbf16>
      %45 = arith.cmpf oeq, %12, %44 : vector<64x128xbf16>
      %46 = arith.extui %45 : vector<64x128xi1> to vector<64x128xi32>
      %47 = arith.sitofp %46 : vector<64x128xi32> to vector<64x128xf32>
      %48 = arith.truncf %47 : vector<64x128xf32> to vector<64x128xbf16>
      %cst_16 = arith.constant dense<0.000000e+00> : vector<64x8xf32>
      %49 = tpu.matmul %48, %13, %cst_16 {dimension_numbers = #tpu.dot_dimension_numbers<[1], [0], [0], [1], [0, 0, 1, 1], [], []>} : vector<64x128xbf16>, vector<128x8xbf16>, vector<64x8xf32> -> vector<64x8xf32>
      %50 = arith.addf %42, %49 : vector<64x8xf32>
      %51 = vector.extract_strided_slice %34 {offsets = [2, 0], sizes = [1, 128], strides = [1, 1]} : vector<8x128xbf16> to vector<1x128xbf16>
      %52 = vector.broadcast %51 : vector<1x128xbf16> to vector<64x128xbf16>
      %53 = arith.cmpf oeq, %12, %52 : vector<64x128xbf16>
      %54 = arith.extui %53 : vector<64x128xi1> to vector<64x128xi32>
      %55 = arith.sitofp %54 : vector<64x128xi32> to vector<64x128xf32>
      %56 = arith.truncf %55 : vector<64x128xf32> to vector<64x128xbf16>
      %cst_17 = arith.constant dense<0.000000e+00> : vector<64x8xf32>
      %57 = tpu.matmul %56, %13, %cst_17 {dimension_numbers = #tpu.dot_dimension_numbers<[1], [0], [0], [1], [0, 0, 1, 1], [], []>} : vector<64x128xbf16>, vector<128x8xbf16>, vector<64x8xf32> -> vector<64x8xf32>
      %58 = arith.addf %50, %57 : vector<64x8xf32>
      %59 = vector.extract_strided_slice %34 {offsets = [3, 0], sizes = [1, 128], strides = [1, 1]} : vector<8x128xbf16> to vector<1x128xbf16>
      %60 = vector.broadcast %59 : vector<1x128xbf16> to vector<64x128xbf16>
      %61 = arith.cmpf oeq, %12, %60 : vector<64x128xbf16>
      %62 = arith.extui %61 : vector<64x128xi1> to vector<64x128xi32>
      %63 = arith.sitofp %62 : vector<64x128xi32> to vector<64x128xf32>
      %64 = arith.truncf %63 : vector<64x128xf32> to vector<64x128xbf16>
      %cst_18 = arith.constant dense<0.000000e+00> : vector<64x8xf32>
      %65 = tpu.matmul %64, %13, %cst_18 {dimension_numbers = #tpu.dot_dimension_numbers<[1], [0], [0], [1], [0, 0, 1, 1], [], []>} : vector<64x128xbf16>, vector<128x8xbf16>, vector<64x8xf32> -> vector<64x8xf32>
      %66 = arith.addf %58, %65 : vector<64x8xf32>
      %67 = vector.extract_strided_slice %34 {offsets = [4, 0], sizes = [1, 128], strides = [1, 1]} : vector<8x128xbf16> to vector<1x128xbf16>
      %68 = vector.broadcast %67 : vector<1x128xbf16> to vector<64x128xbf16>
      %69 = arith.cmpf oeq, %12, %68 : vector<64x128xbf16>
      %70 = arith.extui %69 : vector<64x128xi1> to vector<64x128xi32>
      %71 = arith.sitofp %70 : vector<64x128xi32> to vector<64x128xf32>
      %72 = arith.truncf %71 : vector<64x128xf32> to vector<64x128xbf16>
      %cst_19 = arith.constant dense<0.000000e+00> : vector<64x8xf32>
      %73 = tpu.matmul %72, %13, %cst_19 {dimension_numbers = #tpu.dot_dimension_numbers<[1], [0], [0], [1], [0, 0, 1, 1], [], []>} : vector<64x128xbf16>, vector<128x8xbf16>, vector<64x8xf32> -> vector<64x8xf32>
      %74 = arith.addf %66, %73 : vector<64x8xf32>
      %75 = vector.extract_strided_slice %34 {offsets = [5, 0], sizes = [1, 128], strides = [1, 1]} : vector<8x128xbf16> to vector<1x128xbf16>
      %76 = vector.broadcast %75 : vector<1x128xbf16> to vector<64x128xbf16>
      %77 = arith.cmpf oeq, %12, %76 : vector<64x128xbf16>
      %78 = arith.extui %77 : vector<64x128xi1> to vector<64x128xi32>
      %79 = arith.sitofp %78 : vector<64x128xi32> to vector<64x128xf32>
      %80 = arith.truncf %79 : vector<64x128xf32> to vector<64x128xbf16>
      %cst_20 = arith.constant dense<0.000000e+00> : vector<64x8xf32>
      %81 = tpu.matmul %80, %13, %cst_20 {dimension_numbers = #tpu.dot_dimension_numbers<[1], [0], [0], [1], [0, 0, 1, 1], [], []>} : vector<64x128xbf16>, vector<128x8xbf16>, vector<64x8xf32> -> vector<64x8xf32>
      %82 = arith.addf %74, %81 : vector<64x8xf32>
      %83 = vector.extract_strided_slice %34 {offsets = [6, 0], sizes = [1, 128], strides = [1, 1]} : vector<8x128xbf16> to vector<1x128xbf16>
      %84 = vector.broadcast %83 : vector<1x128xbf16> to vector<64x128xbf16>
      %85 = arith.cmpf oeq, %12, %84 : vector<64x128xbf16>
      %86 = arith.extui %85 : vector<64x128xi1> to vector<64x128xi32>
      %87 = arith.sitofp %86 : vector<64x128xi32> to vector<64x128xf32>
      %88 = arith.truncf %87 : vector<64x128xf32> to vector<64x128xbf16>
      %cst_21 = arith.constant dense<0.000000e+00> : vector<64x8xf32>
      %89 = tpu.matmul %88, %13, %cst_21 {dimension_numbers = #tpu.dot_dimension_numbers<[1], [0], [0], [1], [0, 0, 1, 1], [], []>} : vector<64x128xbf16>, vector<128x8xbf16>, vector<64x8xf32> -> vector<64x8xf32>
      %90 = arith.addf %82, %89 : vector<64x8xf32>
      %91 = vector.extract_strided_slice %34 {offsets = [7, 0], sizes = [1, 128], strides = [1, 1]} : vector<8x128xbf16> to vector<1x128xbf16>
      %92 = vector.broadcast %91 : vector<1x128xbf16> to vector<64x128xbf16>
      %93 = arith.cmpf oeq, %12, %92 : vector<64x128xbf16>
      %94 = arith.extui %93 : vector<64x128xi1> to vector<64x128xi32>
      %95 = arith.sitofp %94 : vector<64x128xi32> to vector<64x128xf32>
      %96 = arith.truncf %95 : vector<64x128xf32> to vector<64x128xbf16>
      %cst_22 = arith.constant dense<0.000000e+00> : vector<64x8xf32>
      %97 = tpu.matmul %96, %13, %cst_22 {dimension_numbers = #tpu.dot_dimension_numbers<[1], [0], [0], [1], [0, 0, 1, 1], [], []>} : vector<64x128xbf16>, vector<128x8xbf16>, vector<64x8xf32> -> vector<64x8xf32>
      %98 = arith.addf %90, %97 : vector<64x8xf32>
      %c1_i32_23 = arith.constant 1 : i32
      %99 = arith.addf %9, %98 : vector<64x8xf32>
      %c0_24 = arith.constant 0 : index
      %c0_25 = arith.constant 0 : index
      %100 = vector.load %arg14[%c0_24, %c0_25] : memref<64x8xf32, #tpu.memory_space<vmem>>, vector<64x8xf32>
      tpu.vector_store %arg14[%c0_24, %c0_25], %99 {strides = array<i32>} : memref<64x8xf32, #tpu.memory_space<vmem>>, vector<64x8xf32>,
      %c0_i32_26 = arith.constant 0 : i32
      %101 = arith.cmpi eq, %arg2, %c0_i32_26 : i32
      %102 = arith.extui %101 : i1 to i32
      %c0_i32_27 = arith.constant 0 : i32
      %103 = arith.cmpi ne, %102, %c0_i32_27 : i32
      scf.if %103 {
        %c0_28 = arith.constant 0 : index
        %c0_29 = arith.constant 0 : index
        %104 = vector.load %arg14[%c0_28, %c0_29] : memref<64x8xf32, #tpu.memory_space<vmem>>, vector<64x8xf32>
        %105 = tpu.transpose %104, [1, 0] : vector<64x8xf32> -> vector<8x64xf32>
        %106 = vector.extract_strided_slice %105 {offsets = [0, 0], sizes = [1, 64], strides = [1, 1]} : vector<8x64xf32> to vector<1x64xf32>
        %107 = tpu.iota {dimensions = array<i32: 1>} : vector<1x64xi32>
        %cst_30 = arith.constant dense<0xFF800000> : vector<1xf32>
        %108 = vector.multi_reduction <maximumf>, %106, %cst_30 [1] : vector<1x64xf32> to vector<1xf32>
        %109 = vector.shape_cast %108 : vector<1xf32> to vector<1x1xf32>
        %cst_31 = arith.constant 5.000000e-01 : f32
        %110 = vector.broadcast %cst_31 : f32 to vector<1x1xf32>
        %111 = arith.mulf %109, %110 : vector<1x1xf32>
        %112 = vector.broadcast %109 : vector<1x1xf32> to vector<1x64xf32>
        %113 = arith.cmpf oeq, %106, %112 : vector<1x64xf32>
        %c64_i32 = arith.constant 64 : i32
        %114 = vector.broadcast %c64_i32 : i32 to vector<1x64xi32>
        %115 = arith.select %113, %107, %114 : vector<1x64xi1>, vector<1x64xi32>
        %cst_32 = arith.constant dense<2147483647> : vector<1xi32>
        %116 = vector.multi_reduction <minsi>, %115, %cst_32 [1] : vector<1x64xi32> to vector<1xi32>
        %117 = vector.shape_cast %116 : vector<1xi32> to vector<1x1xi32>
        %118 = vector.broadcast %117 : vector<1x1xi32> to vector<1x64xi32>
        %119 = arith.cmpi slt, %107, %118 : vector<1x64xi32>
        %120 = vector.broadcast %111 : vector<1x1xf32> to vector<1x64xf32>
        %121 = arith.cmpf ogt, %106, %120 : vector<1x64xf32>
        %122 = arith.ori %119, %121 : vector<1x64xi1>
        %c64_i32_33 = arith.constant 64 : i32
        %123 = vector.broadcast %c64_i32_33 : i32 to vector<1x64xi32>
        %124 = arith.select %122, %123, %107 : vector<1x64xi1>, vector<1x64xi32>
        %cst_34 = arith.constant dense<2147483647> : vector<1xi32>
        %125 = vector.multi_reduction <minsi>, %124, %cst_34 [1] : vector<1x64xi32> to vector<1xi32>
        %126 = vector.shape_cast %125 : vector<1xi32> to vector<1x1xi32>
        %c64_i32_35 = arith.constant 64 : i32
        %127 = vector.broadcast %c64_i32_35 : i32 to vector<1x1xi32>
        %128 = arith.cmpi sge, %126, %127 : vector<1x1xi32>
        %c0_i32_36 = arith.constant 0 : i32
        %129 = vector.broadcast %c0_i32_36 : i32 to vector<1x1xi32>
        %130 = arith.select %128, %129, %126 : vector<1x1xi1>, vector<1x1xi32>
        %131 = arith.sitofp %130 : vector<1x1xi32> to vector<1x1xf32>
        %cst_37 = arith.constant 6.400000e+01 : f32
        %132 = vector.broadcast %cst_37 : f32 to vector<1x1xf32>
        %133 = arith.divf %131, %132 : vector<1x1xf32>
        %134 = vector.shape_cast %133 : vector<1x1xf32> to vector<1x1xf32>
        %135 = vector.broadcast %134 : vector<1x1xf32> to vector<1x128xf32>
        %c0_38 = arith.constant 0 : index
        %c0_39 = arith.constant 0 : index
        %c0_40 = arith.constant 0 : index
        %136 = vector.load %arg13[%c0_38, %c0_39, %c0_40] : memref<1x1x128xf32, #tpu.memory_space<vmem>>, vector<1x1x128xf32>
        %137 = vector.shape_cast %136 : vector<1x1x128xf32> to vector<1x128xf32>
        %138 = vector.shape_cast %135 : vector<1x128xf32> to vector<1x1x128xf32>
        tpu.vector_store %arg13[%c0_38, %c0_39, %c0_40], %138 {strides = array<i32>} : memref<1x1x128xf32, #tpu.memory_space<vmem>>, vector<1x1x128xf32>,
        %c0_41 = arith.constant 0 : index
        %c0_42 = arith.constant 0 : index
        %139 = vector.load %arg4[%c0_41, %c0_42] : memref<64x32xf32, #tpu.memory_space<vmem>>, vector<64x32xf32>
        %cst_43 = arith.constant dense<0.000000e+00> : vector<8x32xf32>
        %140 = tpu.matmul %105, %139, %cst_43 {dimension_numbers = #tpu.dot_dimension_numbers<[1], [0], [0], [1], [0, 0, 1, 1], [], []>} : vector<8x64xf32>, vector<64x32xf32>, vector<8x32xf32> -> vector<8x32xf32>
        %c0_44 = arith.constant 0 : index
        %c0_45 = arith.constant 0 : index
        %141 = vector.load %arg5[%c0_44, %c0_45] : memref<1x32xf32, #tpu.memory_space<vmem>>, vector<1x32xf32>
        %142 = vector.broadcast %141 : vector<1x32xf32> to vector<8x32xf32>
        %143 = arith.addf %140, %142 : vector<8x32xf32>
        %cst_46 = arith.constant 0.000000e+00 : f32
        %144 = vector.broadcast %cst_46 : f32 to vector<8x32xf32>
        %145 = arith.maximumf %143, %144 : vector<8x32xf32>
        %c0_47 = arith.constant 0 : index
        %c0_48 = arith.constant 0 : index
        %146 = vector.load %arg6[%c0_47, %c0_48] : memref<32x64xf32, #tpu.memory_space<vmem>>, vector<32x64xf32>
        %cst_49 = arith.constant dense<0.000000e+00> : vector<8x64xf32>
        %147 = tpu.matmul %145, %146, %cst_49 {dimension_numbers = #tpu.dot_dimension_numbers<[1], [0], [0], [1], [0, 0, 1, 1], [], []>} : vector<8x32xf32>, vector<32x64xf32>, vector<8x64xf32> -> vector<8x64xf32>
        %c0_50 = arith.constant 0 : index
        %c0_51 = arith.constant 0 : index
        %148 = vector.load %arg7[%c0_50, %c0_51] : memref<1x64xf32, #tpu.memory_space<vmem>>, vector<1x64xf32>
        %149 = vector.broadcast %148 : vector<1x64xf32> to vector<8x64xf32>
        %150 = arith.addf %147, %149 : vector<8x64xf32>
        %cst_52 = arith.constant 0.000000e+00 : f32
        %151 = vector.broadcast %cst_52 : f32 to vector<8x64xf32>
        %152 = arith.maximumf %150, %151 : vector<8x64xf32>
        %c0_53 = arith.constant 0 : index
        %c0_54 = arith.constant 0 : index
        %153 = vector.load %arg8[%c0_53, %c0_54] : memref<64x128xf32, #tpu.memory_space<vmem>>, vector<64x128xf32>
        %cst_55 = arith.constant dense<0.000000e+00> : vector<8x128xf32>
        %154 = tpu.matmul %152, %153, %cst_55 {dimension_numbers = #tpu.dot_dimension_numbers<[1], [0], [0], [1], [0, 0, 1, 1], [], []>} : vector<8x64xf32>, vector<64x128xf32>, vector<8x128xf32> -> vector<8x128xf32>
        %c0_56 = arith.constant 0 : index
        %c0_57 = arith.constant 0 : index
        %155 = vector.load %arg9[%c0_56, %c0_57] : memref<1x128xf32, #tpu.memory_space<vmem>>, vector<1x128xf32>
        %156 = vector.broadcast %155 : vector<1x128xf32> to vector<8x128xf32>
        %157 = arith.addf %154, %156 : vector<8x128xf32>
        %cst_58 = arith.constant 0.000000e+00 : f32
        %158 = vector.broadcast %cst_58 : f32 to vector<8x128xf32>
        %159 = arith.maximumf %157, %158 : vector<8x128xf32>
        %c0_59 = arith.constant 0 : index
        %c0_60 = arith.constant 0 : index
        %160 = vector.load %arg10[%c0_59, %c0_60] : memref<1x128xf32, #tpu.memory_space<vmem>>, vector<1x128xf32>
        %161 = vector.broadcast %160 : vector<1x128xf32> to vector<8x128xf32>
        %162 = arith.mulf %159, %161 : vector<8x128xf32>
        %cst_61 = arith.constant dense<0.000000e+00> : vector<8xf32>
        %163 = vector.multi_reduction <add>, %162, %cst_61 [1] : vector<8x128xf32> to vector<8xf32>
        %164 = vector.shape_cast %163 : vector<8xf32> to vector<8x1xf32>
        %c0_62 = arith.constant 0 : index
        %c0_63 = arith.constant 0 : index
        %165 = vector.load %arg11[%c0_62, %c0_63] : memref<1x1xf32, #tpu.memory_space<vmem>>, vector<1x1xf32>
        %166 = vector.broadcast %165 : vector<1x1xf32> to vector<8x1xf32>
        %167 = arith.addf %164, %166 : vector<8x1xf32>
        %168 = vector.extract_strided_slice %167 {offsets = [0, 0], sizes = [1, 1], strides = [1, 1]} : vector<8x1xf32> to vector<1x1xf32>
        %169 = vector.shape_cast %168 : vector<1x1xf32> to vector<1x1xf32>
        %170 = vector.broadcast %169 : vector<1x1xf32> to vector<8x128xf32>
        %c0_64 = arith.constant 0 : index
        %c0_65 = arith.constant 0 : index
        %171 = vector.load %arg15[%c0_64, %c0_65] : memref<8x128xf32, #tpu.memory_space<vmem>>, vector<8x128xf32>
        tpu.vector_store %arg15[%c0_64, %c0_65], %170 {strides = array<i32>} : memref<8x128xf32, #tpu.memory_space<vmem>>, vector<8x128xf32>,
      } else {
      }
    } else {
    }
    %c1_i32 = arith.constant 1 : i32
    %3 = arith.cmpi eq, %arg1, %c1_i32 : i32
    %4 = arith.extui %3 : i1 to i32
    %c0_i32_1 = arith.constant 0 : i32
    %5 = arith.cmpi ne, %4, %c0_i32_1 : i32
    scf.if %5 {
      %c0 = arith.constant 0 : index
      %c0_2 = arith.constant 0 : index
      %6 = vector.load %arg15[%c0, %c0_2] : memref<8x128xf32, #tpu.memory_space<vmem>>, vector<8x128xf32>
      %c0_i32_3 = arith.constant 0 : i32
      %c8_i32 = arith.constant 8 : i32
      %7 = arith.muli %c0_i32_3, %c8_i32 : i32
      %8 = tpu.assume_multiple %7, 8 : i32
      %c0_4 = arith.constant 0 : index
      %9 = arith.index_cast %8 : i32 to index
      %c0_5 = arith.constant 0 : index
      %10 = vector.load %arg3[%c0_4, %9, %c0_5] : memref<1x8x128xf32, #tpu.memory_space<vmem>>, vector<1x8x128xf32>
      %11 = vector.shape_cast %10 : vector<1x8x128xf32> to vector<8x128xf32>
      %12 = arith.mulf %11, %6 : vector<8x128xf32>
      %c0_6 = arith.constant 0 : index
      %13 = arith.index_cast %8 : i32 to index
      %c0_7 = arith.constant 0 : index
      %14 = vector.load %arg12[%c0_6, %13, %c0_7] : memref<1x8x128xf32, #tpu.memory_space<vmem>>, vector<1x8x128xf32>
      %15 = vector.shape_cast %14 : vector<1x8x128xf32> to vector<8x128xf32>
      %16 = vector.shape_cast %12 : vector<8x128xf32> to vector<1x8x128xf32>
      tpu.vector_store %arg12[%c0_6, %13, %c0_7], %16 {strides = array<i32>} : memref<1x8x128xf32, #tpu.memory_space<vmem>>, vector<1x8x128xf32>,
      %c1_i32_8 = arith.constant 1 : i32
    } else {
    }
    return
  }
  func.func @transform_0(%arg0: i32, %arg1: i32, %arg2: i32) -> (i32, i32, i32) {
    %c0_i32 = arith.constant 0 : i32
    %c0_i32_0 = arith.constant 0 : i32
    return %arg0, %arg2, %c0_i32 : i32, i32, i32
  }
  func.func @transform_1(%arg0: i32, %arg1: i32, %arg2: i32) -> (i32, i32) {
    %c0_i32 = arith.constant 0 : i32
    %c0_i32_0 = arith.constant 0 : i32
    %c0_i32_1 = arith.constant 0 : i32
    return %c0_i32, %c0_i32_0 : i32, i32
  }
  func.func @transform_2(%arg0: i32, %arg1: i32, %arg2: i32) -> (i32, i32) {
    %c0_i32 = arith.constant 0 : i32
    %c0_i32_0 = arith.constant 0 : i32
    %c0_i32_1 = arith.constant 0 : i32
    return %c0_i32, %c0_i32_0 : i32, i32
  }
  func.func @transform_3(%arg0: i32, %arg1: i32, %arg2: i32) -> (i32, i32) {
    %c0_i32 = arith.constant 0 : i32
    %c0_i32_0 = arith.constant 0 : i32
    %c0_i32_1 = arith.constant 0 : i32
    return %c0_i32, %c0_i32_0 : i32, i32
  }
  func.func @transform_4(%arg0: i32, %arg1: i32, %arg2: i32) -> (i32, i32) {
    %c0_i32 = arith.constant 0 : i32
    %c0_i32_0 = arith.constant 0 : i32
    %c0_i32_1 = arith.constant 0 : i32
    return %c0_i32, %c0_i32_0 : i32, i32
  }
  func.func @transform_5(%arg0: i32, %arg1: i32, %arg2: i32) -> (i32, i32) {
    %c0_i32 = arith.constant 0 : i32
    %c0_i32_0 = arith.constant 0 : i32
    %c0_i32_1 = arith.constant 0 : i32
    return %c0_i32, %c0_i32_0 : i32, i32
  }
  func.func @transform_6(%arg0: i32, %arg1: i32, %arg2: i32) -> (i32, i32) {
    %c0_i32 = arith.constant 0 : i32
    %c0_i32_0 = arith.constant 0 : i32
    %c0_i32_1 = arith.constant 0 : i32
    return %c0_i32, %c0_i32_0 : i32, i32
  }
  func.func @transform_7(%arg0: i32, %arg1: i32, %arg2: i32) -> (i32, i32) {
    %c0_i32 = arith.constant 0 : i32
    %c0_i32_0 = arith.constant 0 : i32
    %c0_i32_1 = arith.constant 0 : i32
    return %c0_i32, %c0_i32_0 : i32, i32
  }
  func.func @transform_8(%arg0: i32, %arg1: i32, %arg2: i32) -> (i32, i32) {
    %c0_i32 = arith.constant 0 : i32
    %c0_i32_0 = arith.constant 0 : i32
    %c0_i32_1 = arith.constant 0 : i32
    return %c0_i32, %c0_i32_0 : i32, i32
  }
  func.func @transform_9(%arg0: i32, %arg1: i32, %arg2: i32) -> (i32, i32, i32) {
    %0 = arith.muli %arg2, %arg1 : i32
    %c0_i32 = arith.constant 0 : i32
    %c0_i32_0 = arith.constant 0 : i32
    return %arg0, %0, %c0_i32 : i32, i32, i32
  }
  func.func @transform_10(%arg0: i32, %arg1: i32, %arg2: i32) -> (i32, i32, i32) {
    %c0_i32 = arith.constant 0 : i32
    %c0_i32_0 = arith.constant 0 : i32
    %c0_i32_1 = arith.constant 0 : i32
    return %arg0, %c0_i32, %c0_i32_0 : i32, i32, i32
  }
}

</mosaic_0001>

<llo_original>
// kernel: tpu_custom_call.1
$region0: #{tpu_custom_call.1}
  #allocation0 [shape = 'u32[]', space=smem, size = 0x4, offset = 0x4, fixed_abs, tag = 'smem constant byte address 0x4 - core index']
  #allocation1 [shape = 'u32[72,128]{1,0:T(1,128)}', space=vmem, size = 0x9000, scoped, tag = 'internal scratch']
  #allocation2 [shape = 'f32[64,8]{1,0:T(8,128)}', space=vmem, size = 0x8000, scoped, tag = 'scratch operand']
  #allocation3 [shape = 'f32[8,128]{1,0:T(8,128)}', space=vmem, size = 0x1000, scoped, tag = 'scratch operand']
  #allocation4 [shape = 'f32[1,1]{1,0:T(1,128)S(1)}', space=vmem, size = 0x200, scoped, tag = 'scoped memory for tpu_custom_call.1']
  %s0 = inlined_call_operand.hbm [shape: f32[2,8,128], index: 0, kind: input, shape index: {}]
  %s1 = inlined_call_operand.vmem [shape: f32[64,32], index: 1, kind: input, shape index: {}]
  %s2 = inlined_call_operand.vmem [shape: f32[1,32], index: 2, kind: input, shape index: {}]
  %s3 = inlined_call_operand.vmem [shape: f32[32,64], index: 3, kind: input, shape index: {}]
  %s4 = inlined_call_operand.vmem [shape: f32[1,64], index: 4, kind: input, shape index: {}]
  %s5 = inlined_call_operand.vmem [shape: f32[64,128], index: 5, kind: input, shape index: {}]
  %s6 = inlined_call_operand.vmem [shape: f32[1,128], index: 6, kind: input, shape index: {}]
  %s7 = inlined_call_operand.vmem [shape: f32[1,128], index: 7, kind: input, shape index: {}]
  %s8 = inlined_call_operand.<no memory space> [shape: f32[1,1], index: 8, kind: input, shape index: {}]
  %s9 = inlined_call_operand.hbm [shape: f32[2,8,128], index: 9, kind: output, shape index: {0}]
  %s10 = inlined_call_operand.hbm [shape: f32[2,1,128], index: 10, kind: output, shape index: {1}]
  %11 = xla_tuple %s9, %s10
  %s12 = sld [smem:[#allocation0]]
  $region97: #{tpu_custom_call.1} parent=0
    _
  %s14 = ssub.s32 1, %s12
  %s15 = scalar_select 0, %s14, %s12
  %v16 = vstv %s8
  %17 = vst [vmem:[#allocation4] sm:$0x1] %v16
  $region1: #{tpu_custom_call.1} parent=0
    #allocation5 [shape = 'u8[8192]{0}', space=vmem, size = 0x2000, scoped, tag = 'input window, operand 0']
    #allocation6 [shape = 's32[2]{0}', space=sflag, size = 0x8, scoped, tag = 'scoped memory for tpu_custom_call.1']
    #allocation7 [shape = 's32[2]{0}', space=sflag, size = 0x8, scoped, tag = 'scoped memory for tpu_custom_call.1']
    #allocation8 [shape = 'u8[8192]{0}', space=vmem, size = 0x2000, scoped, tag = 'output window, operand 0']
    #allocation9 [shape = 'u8[1024]{0}', space=vmem, size = 0x400, scoped, tag = 'output window, operand 1']
    #allocation10 [shape = 's32[2]{0}', space=sflag, size = 0x8, scoped, tag = 'scoped memory for tpu_custom_call.1']
    %18 = vsyncpa [#allocation6], 0
    %s19 = scalar_lea.sflag [#allocation6], 1
    %20 = vsyncpa %s19, 0
    %21 = vsyncpa [#allocation7], 0
    %s22 = scalar_lea.sflag [#allocation7], 1
    %23 = vsyncpa %s22, 0
    %24 = vsyncpa [#allocation10], 0
    %s25 = scalar_lea.sflag [#allocation10], 1
    %26 = vsyncpa %s25, 0
    loop: start=0, step=1, limit=6
    $region2: #{tpu_custom_call.1} parent=1 // loop_pre_header
      _
    $region3: #{tpu_custom_call.1} parent=1 // loop_header
      %s28 = sphi 0, %s32
      %p29 = scmp.ge.s32.totalorder %s28, 6
      %s35 = sphi 0, %s54
      %s36 = sphi 0, %s50
      %s37 = sphi 0, %s46
      %s38 = sphi 0, %s35
      %s39 = sphi 0, %s36
      %s40 = sphi 0, %s37
      %s41 = sphi 0, %s38
      %s42 = sphi 0, %s39
      %s43 = sphi 0, %s40
      %s59 = sphi 0, %s61
      %s62 = sphi 0, %s59
      %s63 = sphi 0, %s62
      %s79 = sphi 0, %s63
      %s83 = sphi 0, %s83
      %s85 = sphi 0, %s83
      %s86 = sphi 0, %s85
      %s100 = sphi 0, %s86
      %s104 = sphi 0, %s104
      %s106 = sphi 0, %s104
      %s107 = sphi 0, %s106
      %s121 = sphi 0, %s107
      %s125 = sphi 0, %s125
      %s127 = sphi 0, %s125
      %s128 = sphi 0, %s127
      %s142 = sphi 0, %s128
      %s146 = sphi 0, %s146
      %s148 = sphi 0, %s146
      %s149 = sphi 0, %s148
      %s163 = sphi 0, %s149
      %s167 = sphi 0, %s167
      %s169 = sphi 0, %s167
      %s170 = sphi 0, %s169
      %s184 = sphi 0, %s170
      %s188 = sphi 0, %s188
      %s190 = sphi 0, %s188
      %s191 = sphi 0, %s190
      %s205 = sphi 0, %s191
      %s209 = sphi 0, %s209
      %s211 = sphi 0, %s209
      %s212 = sphi 0, %s211
      %s226 = sphi 0, %s212
      %s230 = sphi 0, %s230
      %s232 = sphi 0, %s230
      %s233 = sphi 0, %s232
      %s247 = sphi 0, %s233
      %s257 = sphi 0, %s259
      %s260 = sphi 0, %s257
      %s261 = sphi 0, %s260
      %s277 = sphi 0, %s261
      %s283 = sphi 0, %s285
      %s286 = sphi 0, %s283
      %s287 = sphi 0, %s286
      %s303 = sphi 0, %s287
    $region4: #{tpu_custom_call.1} parent=1 // loop_header_branch
      %31 = sbr.rel (%p29) target = $region8
    $region5: #{tpu_custom_call.1} parent=1 // loop_body
      %s33 = ssub.s32 %s28, 1
      %s34 = ssub.s32 %s28, 2
      %s44 = sadd.s32 1, %s37
      %p45 = scmp.ge.s32.totalorder %s44, 1
      %s46 = scalar_select %p45, 0, %s44
      %s47 = sadd.s32 1, %s36
      %s48 = scalar_select %p45, %s47, %s36
      %p49 = scmp.ge.s32.totalorder %s48, 2
      %s50 = scalar_select %p49, 0, %s48
      %s51 = sadd.s32 1, %s35
      %s52 = scalar_select %p49, %s51, %s35
      %p53 = scmp.ge.s32.totalorder %s52, 2
      %s54 = scalar_select %p53, 0, %s52
      %s55 = ssub.s32 %s35, %s54
      %s56 = ssub.s32 %s37, %s46
      %s57 = sor.u32 %s55, %s56
      %p58 = scmp.eq.s32.totalorder %s57, 0
      %s60 = sadd.s32 %s59, 1
      %s61 = scalar_select %p58, %s59, %s60
      %p64 = pneg %p58
      %p65 = scmp.eq.s32.totalorder %s28, 3
      %p66 = por %p64, %p65
      %p67 = scmp.ne.s32.totalorder %s59, %s62
      %p68 = scmp.eq.s32.totalorder %s28, 0
      %p69 = por %p67, %p68
      %p70 = scmp.ne.s32.totalorder %s59, %s62
      %p71 = scmp.eq.s32.totalorder %s33, 3
      %p72 = por %p70, %p71
      %p73 = scmp.ne.s32.totalorder %s62, %s63
      %p74 = scmp.eq.s32.totalorder %s33, 0
      %p75 = por %p73, %p74
      %p76 = scmp.ne.s32.totalorder %s62, %s63
      %p77 = scmp.eq.s32.totalorder %s34, 3
      %p78 = por %p76, %p77
      %p80 = scmp.ne.s32.totalorder %s63, %s79
      %p81 = scmp.eq.s32.totalorder %s34, 0
      %p82 = por %p80, %p81
      %s84 = sadd.s32 %s83, 1
      %p87 = scmp.eq.s32.totalorder %s28, 3
      %p88 = scmp.ne.s32.totalorder %s83, %s85
      %p89 = scmp.eq.s32.totalorder %s28, 0
      %p90 = por %p88, %p89
      %p91 = scmp.ne.s32.totalorder %s83, %s85
      %p92 = scmp.eq.s32.totalorder %s33, 3
      %p93 = por %p91, %p92
      %p94 = scmp.ne.s32.totalorder %s85, %s86
      %p95 = scmp.eq.s32.totalorder %s33, 0
      %p96 = por %p94, %p95
      %p97 = scmp.ne.s32.totalorder %s85, %s86
      %p98 = scmp.eq.s32.totalorder %s34, 3
      %p99 = por %p97, %p98
      %p101 = scmp.ne.s32.totalorder %s86, %s100
      %p102 = scmp.eq.s32.totalorder %s34, 0
      %p103 = por %p101, %p102
      %s105 = sadd.s32 %s104, 1
      %p108 = scmp.eq.s32.totalorder %s28, 3
      %p109 = scmp.ne.s32.totalorder %s104, %s106
      %p110 = scmp.eq.s32.totalorder %s28, 0
      %p111 = por %p109, %p110
      %p112 = scmp.ne.s32.totalorder %s104, %s106
      %p113 = scmp.eq.s32.totalorder %s33, 3
      %p114 = por %p112, %p113
      %p115 = scmp.ne.s32.totalorder %s106, %s107
      %p116 = scmp.eq.s32.totalorder %s33, 0
      %p117 = por %p115, %p116
      %p118 = scmp.ne.s32.totalorder %s106, %s107
      %p119 = scmp.eq.s32.totalorder %s34, 3
      %p120 = por %p118, %p119
      %p122 = scmp.ne.s32.totalorder %s107, %s121
      %p123 = scmp.eq.s32.totalorder %s34, 0
      %p124 = por %p122, %p123
      %s126 = sadd.s32 %s125, 1
      %p129 = scmp.eq.s32.totalorder %s28, 3
      %p130 = scmp.ne.s32.totalorder %s125, %s127
      %p131 = scmp.eq.s32.totalorder %s28, 0
      %p132 = por %p130, %p131
      %p133 = scmp.ne.s32.totalorder %s125, %s127
      %p134 = scmp.eq.s32.totalorder %s33, 3
      %p135 = por %p133, %p134
      %p136 = scmp.ne.s32.totalorder %s127, %s128
      %p137 = scmp.eq.s32.totalorder %s33, 0
      %p138 = por %p136, %p137
      %p139 = scmp.ne.s32.totalorder %s127, %s128
      %p140 = scmp.eq.s32.totalorder %s34, 3
      %p141 = por %p139, %p140
      %p143 = scmp.ne.s32.totalorder %s128, %s142
      %p144 = scmp.eq.s32.totalorder %s34, 0
      %p145 = por %p143, %p144
      %s147 = sadd.s32 %s146, 1
      %p150 = scmp.eq.s32.totalorder %s28, 3
      %p151 = scmp.ne.s32.totalorder %s146, %s148
      %p152 = scmp.eq.s32.totalorder %s28, 0
      %p153 = por %p151, %p152
      %p154 = scmp.ne.s32.totalorder %s146, %s148
      %p155 = scmp.eq.s32.totalorder %s33, 3
      %p156 = por %p154, %p155
      %p157 = scmp.ne.s32.totalorder %s148, %s149
      %p158 = scmp.eq.s32.totalorder %s33, 0
      %p159 = por %p157, %p158
      %p160 = scmp.ne.s32.totalorder %s148, %s149
      %p161 = scmp.eq.s32.totalorder %s34, 3
      %p162 = por %p160, %p161
      %p164 = scmp.ne.s32.totalorder %s149, %s163
      %p165 = scmp.eq.s32.totalorder %s34, 0
      %p166 = por %p164, %p165
      %s168 = sadd.s32 %s167, 1
      %p171 = scmp.eq.s32.totalorder %s28, 3
      %p172 = scmp.ne.s32.totalorder %s167, %s169
      %p173 = scmp.eq.s32.totalorder %s28, 0
      %p174 = por %p172, %p173
      %p175 = scmp.ne.s32.totalorder %s167, %s169
      %p176 = scmp.eq.s32.totalorder %s33, 3
      %p177 = por %p175, %p176
      %p178 = scmp.ne.s32.totalorder %s169, %s170
      %p179 = scmp.eq.s32.totalorder %s33, 0
      %p180 = por %p178, %p179
      %p181 = scmp.ne.s32.totalorder %s169, %s170
      %p182 = scmp.eq.s32.totalorder %s34, 3
      %p183 = por %p181, %p182
      %p185 = scmp.ne.s32.totalorder %s170, %s184
      %p186 = scmp.eq.s32.totalorder %s34, 0
      %p187 = por %p185, %p186
      %s189 = sadd.s32 %s188, 1
      %p192 = scmp.eq.s32.totalorder %s28, 3
      %p193 = scmp.ne.s32.totalorder %s188, %s190
      %p194 = scmp.eq.s32.totalorder %s28, 0
      %p195 = por %p193, %p194
      %p196 = scmp.ne.s32.totalorder %s188, %s190
      %p197 = scmp.eq.s32.totalorder %s33, 3
      %p198 = por %p196, %p197
      %p199 = scmp.ne.s32.totalorder %s190, %s191
      %p200 = scmp.eq.s32.totalorder %s33, 0
      %p201 = por %p199, %p200
      %p202 = scmp.ne.s32.totalorder %s190, %s191
      %p203 = scmp.eq.s32.totalorder %s34, 3
      %p204 = por %p202, %p203
      %p206 = scmp.ne.s32.totalorder %s191, %s205
      %p207 = scmp.eq.s32.totalorder %s34, 0
      %p208 = por %p206, %p207
      %s210 = sadd.s32 %s209, 1
      %p213 = scmp.eq.s32.totalorder %s28, 3
      %p214 = scmp.ne.s32.totalorder %s209, %s211
      %p215 = scmp.eq.s32.totalorder %s28, 0
      %p216 = por %p214, %p215
      %p217 = scmp.ne.s32.totalorder %s209, %s211
      %p218 = scmp.eq.s32.totalorder %s33, 3
      %p219 = por %p217, %p218
      %p220 = scmp.ne.s32.totalorder %s211, %s212
      %p221 = scmp.eq.s32.totalorder %s33, 0
      %p222 = por %p220, %p221
      %p223 = scmp.ne.s32.totalorder %s211, %s212
      %p224 = scmp.eq.s32.totalorder %s34, 3
      %p225 = por %p223, %p224
      %p227 = scmp.ne.s32.totalorder %s212, %s226
      %p228 = scmp.eq.s32.totalorder %s34, 0
      %p229 = por %p227, %p228
      %s231 = sadd.s32 %s230, 1
      %p234 = scmp.eq.s32.totalorder %s28, 3
      %p235 = scmp.ne.s32.totalorder %s230, %s232
      %p236 = scmp.eq.s32.totalorder %s28, 0
      %p237 = por %p235, %p236
      %p238 = scmp.ne.s32.totalorder %s230, %s232
      %p239 = scmp.eq.s32.totalorder %s33, 3
      %p240 = por %p238, %p239
      %p241 = scmp.ne.s32.totalorder %s232, %s233
      %p242 = scmp.eq.s32.totalorder %s33, 0
      %p243 = por %p241, %p242
      %p244 = scmp.ne.s32.totalorder %s232, %s233
      %p245 = scmp.eq.s32.totalorder %s34, 3
      %p246 = por %p244, %p245
      %p248 = scmp.ne.s32.totalorder %s233, %s247
      %p249 = scmp.eq.s32.totalorder %s34, 0
      %p250 = por %p248, %p249
      %s251 = smul.u32 %s37, %s36
      %s252 = smul.u32 %s46, %s50
      %s253 = ssub.s32 %s35, %s54
      %s254 = ssub.s32 %s251, %s252
      %s255 = sor.u32 %s253, %s254
      %p256 = scmp.eq.s32.totalorder %s255, 0
      %s258 = sadd.s32 %s257, 1
      %s259 = scalar_select %p256, %s257, %s258
      %p262 = pneg %p256
      %p263 = scmp.eq.s32.totalorder %s28, 3
      %p264 = por %p262, %p263
      %p265 = scmp.ne.s32.totalorder %s257, %s260
      %p266 = scmp.eq.s32.totalorder %s28, 0
      %p267 = por %p265, %p266
      %p268 = scmp.ne.s32.totalorder %s257, %s260
      %p269 = scmp.eq.s32.totalorder %s33, 3
      %p270 = por %p268, %p269
      %p271 = scmp.ne.s32.totalorder %s260, %s261
      %p272 = scmp.eq.s32.totalorder %s33, 0
      %p273 = por %p271, %p272
      %p274 = scmp.ne.s32.totalorder %s260, %s261
      %p275 = scmp.eq.s32.totalorder %s34, 3
      %p276 = por %p274, %p275
      %p278 = scmp.ne.s32.totalorder %s261, %s277
      %p279 = scmp.eq.s32.totalorder %s34, 0
      %p280 = por %p278, %p279
      %s281 = ssub.s32 %s35, %s54
      %p282 = scmp.eq.s32.totalorder %s281, 0
      %s284 = sadd.s32 %s283, 1
      %s285 = scalar_select %p282, %s283, %s284
      %p288 = pneg %p282
      %p289 = scmp.eq.s32.totalorder %s28, 3
      %p290 = por %p288, %p289
      %p291 = scmp.ne.s32.totalorder %s283, %s286
      %p292 = scmp.eq.s32.totalorder %s28, 0
      %p293 = por %p291, %p292
      %p294 = scmp.ne.s32.totalorder %s283, %s286
      %p295 = scmp.eq.s32.totalorder %s33, 3
      %p296 = por %p294, %p295
      %p297 = scmp.ne.s32.totalorder %s286, %s287
      %p298 = scmp.eq.s32.totalorder %s33, 0
      %p299 = por %p297, %p298
      %p300 = scmp.ne.s32.totalorder %s286, %s287
      %p301 = scmp.eq.s32.totalorder %s34, 3
      %p302 = por %p300, %p301
      %p304 = scmp.ne.s32.totalorder %s287, %s303
      %p305 = scmp.eq.s32.totalorder %s34, 0
      %p306 = por %p304, %p305
      %p307 = scmp.le.s32.totalorder 1, %s28
      %p308 = scmp.lt.s32.totalorder %s28, 5
      %p309 = pnand %p307, %p308
      %p310 = pneg %p309
      // Predicated region
      $region9: #{tpu_custom_call.1} parent=5 // pred_check
        _
      $region10: #{tpu_custom_call.1} parent=5 // pred_check_branch
        %312 = sbr.rel (%p309) target = $region12
      $region11: #{tpu_custom_call.1} parent=5 // pred_region
        %s313 = ssub.s32 %s28, 1
        // Predicated region
        $region13: #{tpu_custom_call.1} parent=11 // pred_check
          %p314 = pneg %p96
        $region14: #{tpu_custom_call.1} parent=11 // pred_check_branch
          %316 = sbr.rel (%p314) target = $region16
        $region15: #{tpu_custom_call.1} parent=11 // pred_region
          _
        $region16: #{tpu_custom_call.1} parent=11 // pred_fallthru
          _
        // Predicated region
        $region17: #{tpu_custom_call.1} parent=11 // pred_check
          %p317 = pneg %p117
        $region18: #{tpu_custom_call.1} parent=11 // pred_check_branch
          %319 = sbr.rel (%p317) target = $region20
        $region19: #{tpu_custom_call.1} parent=11 // pred_region
          _
        $region20: #{tpu_custom_call.1} parent=11 // pred_fallthru
          _
        // Predicated region
        $region21: #{tpu_custom_call.1} parent=11 // pred_check
          %p320 = pneg %p138
        $region22: #{tpu_custom_call.1} parent=11 // pred_check_branch
          %322 = sbr.rel (%p320) target = $region24
        $region23: #{tpu_custom_call.1} parent=11 // pred_region
          _
        $region24: #{tpu_custom_call.1} parent=11 // pred_fallthru
          _
        // Predicated region
        $region25: #{tpu_custom_call.1} parent=11 // pred_check
          %p323 = pneg %p159
        $region26: #{tpu_custom_call.1} parent=11 // pred_check_branch
          %325 = sbr.rel (%p323) target = $region28
        $region27: #{tpu_custom_call.1} parent=11 // pred_region
          _
        $region28: #{tpu_custom_call.1} parent=11 // pred_fallthru
          _
        // Predicated region
        $region29: #{tpu_custom_call.1} parent=11 // pred_check
          %p326 = pneg %p180
        $region30: #{tpu_custom_call.1} parent=11 // pred_check_branch
          %328 = sbr.rel (%p326) target = $region32
        $region31: #{tpu_custom_call.1} parent=11 // pred_region
          _
        $region32: #{tpu_custom_call.1} parent=11 // pred_fallthru
          _
        // Predicated region
        $region33: #{tpu_custom_call.1} parent=11 // pred_check
          %p329 = pneg %p201
        $region34: #{tpu_custom_call.1} parent=11 // pred_check_branch
          %331 = sbr.rel (%p329) target = $region36
        $region35: #{tpu_custom_call.1} parent=11 // pred_region
          _
        $region36: #{tpu_custom_call.1} parent=11 // pred_fallthru
          _
        // Predicated region
        $region37: #{tpu_custom_call.1} parent=11 // pred_check
          %p332 = pneg %p222
        $region38: #{tpu_custom_call.1} parent=11 // pred_check_branch
          %334 = sbr.rel (%p332) target = $region40
        $region39: #{tpu_custom_call.1} parent=11 // pred_region
          _
        $region40: #{tpu_custom_call.1} parent=11 // pred_fallthru
          _
        // Predicated region
        $region41: #{tpu_custom_call.1} parent=11 // pred_check
          %p335 = pneg %p243
        $region42: #{tpu_custom_call.1} parent=11 // pred_check_branch
          %337 = sbr.rel (%p335) target = $region44
        $region43: #{tpu_custom_call.1} parent=11 // pred_region
          _
        $region44: #{tpu_custom_call.1} parent=11 // pred_fallthru
          _
      $region12: #{tpu_custom_call.1} parent=5 // pred_fallthru
        _
      %p338 = scmp.lt.s32.totalorder %s28, 4
      // Predicated region
      $region45: #{tpu_custom_call.1} parent=5 // pred_check
        %p339 = pneg %p338
      $region46: #{tpu_custom_call.1} parent=5 // pred_check_branch
        %341 = sbr.rel (%p339) target = $region48
      $region47: #{tpu_custom_call.1} parent=5 // pred_region
        // Predicated region
        $region49: #{tpu_custom_call.1} parent=47 // pred_check
          %p342 = pneg %p69
        $region50: #{tpu_custom_call.1} parent=47 // pred_check_branch
          %344 = sbr.rel (%p342) target = $region52
        $region51: #{tpu_custom_call.1} parent=47 // pred_region
          %s345 = sand.u32 %s59, 1
          %s346 = scalar_lea.sflag [#allocation6], %s345
          %s347 = sand.u32 %s59, 1
          %s348 = smul.addr %s347, 8
          %s349 = scalar_lea.vmem [#allocation5], %s348
          %351 = vsyncadd %s346, 0
          %s352 = sadd.s32 %s37, %s35
          %s353 = smul.addr %s352, 8
          %s354 = scalar_lea.hbm %s0, %s353
          %s356 = sshll.u32 %s354, 4
          %s357 = int_to_ptr.hbm [resolvable:$true] %s356
          %s358 = sshll.u32 %s349, 4
          %s359 = int_to_ptr.vmem [resolvable:$true] %s358
          %361 = dma.hbm_to_vmem [thread:$0]  %s357, 128, %s359, %s346
        $region52: #{tpu_custom_call.1} parent=47 // pred_fallthru
          _
      $region48: #{tpu_custom_call.1} parent=5 // pred_fallthru
        _
      %p362 = scmp.le.s32.totalorder 1, %s28
      %p363 = scmp.lt.s32.totalorder %s28, 5
      %p364 = pnand %p362, %p363
      %p365 = pneg %p364
      // Predicated region
      $region53: #{tpu_custom_call.1} parent=5 // pred_check
        _
      $region54: #{tpu_custom_call.1} parent=5 // pred_check_branch
        %367 = sbr.rel (%p364) target = $region56
      $region55: #{tpu_custom_call.1} parent=5 // pred_region
        %s368 = ssub.s32 %s28, 1
        %s369 = sand.u32 %s62, 1
        %s370 = scalar_lea.sflag [#allocation6], %s369
        %s371 = sand.u32 %s62, 1
        %s372 = smul.addr %s371, 8
        %s373 = scalar_lea.vmem [#allocation5], %s372
        // Predicated region
        $region57: #{tpu_custom_call.1} parent=55 // pred_check
          %p374 = pneg %p75
        $region58: #{tpu_custom_call.1} parent=55 // pred_check_branch
          %376 = sbr.rel (%p374) target = $region60
        $region59: #{tpu_custom_call.1} parent=55 // pred_region
          %378 = dma.done %s370, 128
        $region60: #{tpu_custom_call.1} parent=55 // pred_fallthru
          _
        %s379 = sand.u32 %s62, 1
        %s380 = scalar_lea.sflag [#allocation6], %s379
        %s381 = sand.u32 %s62, 1
        %s382 = smul.addr %s381, 8
        %s383 = scalar_lea.vmem [#allocation5], %s382
        %p384 = pneg %p75
        %p385 = pneg %p72
        %p386 = pneg %p96
        %p387 = pneg %p93
        %p388 = pneg %p117
        %p389 = pneg %p114
        %p390 = pneg %p138
        %p391 = pneg %p135
        %p392 = pneg %p159
        %p393 = pneg %p156
        %p394 = pneg %p180
        %p395 = pneg %p177
        %p396 = pneg %p201
        %p397 = pneg %p198
        %p398 = pneg %p222
        %p399 = pneg %p219
        %p400 = pneg %p243
        %p401 = pneg %p240
        %p402 = pneg %p273
        %p403 = pneg %p270
        %s404 = sand.u32 %s260, 1
        %s405 = scalar_lea.sflag [#allocation7], %s404
        %s406 = sand.u32 %s260, 1
        %s407 = smul.addr %s406, 8
        %s408 = scalar_lea.vmem [#allocation8], %s407
        %p409 = pneg %p299
        %p410 = pneg %p296
        %s411 = sand.u32 %s286, 1
        %s412 = scalar_lea.sflag [#allocation10], %s411
        %s413 = sand.u32 %s286, 1
        %s414 = scalar_lea.vmem [#allocation9], %s413
        %s415 = smul.u32 %s40, %s39
        %p417 = scmp.eq.s32.totalorder %s39, 0
        // Predicated region
        $region61: #{tpu_custom_call.1} parent=55 // pred_check
          %p418 = pneg %p417
        $region62: #{tpu_custom_call.1} parent=55 // pred_check_branch
          %420 = sbr.rel (%p418) target = $region64
        $region63: #{tpu_custom_call.1} parent=55 // pred_region
          %p421 = scmp.eq.s32.totalorder %s40, 0
          // Predicated region
          $region65: #{tpu_custom_call.1} parent=63 // pred_check
            %p422 = pneg %p421
          $region66: #{tpu_custom_call.1} parent=63 // pred_check_branch
            %424 = sbr.rel (%p422) target = $region68
          $region67: #{tpu_custom_call.1} parent=63 // pred_region
            %vm425 = vcmask 64512
            %426 = vst.msk [vmem:[#allocation2] sm:$0xff] %vm425, 0.0
            %427 = vst.msk [vmem:[#allocation2 + $0x8] sm:$0xff] %vm425, 0.0
            %428 = vst.msk [vmem:[#allocation2 + $0x10] sm:$0xff] %vm425, 0.0
            %429 = vst.msk [vmem:[#allocation2 + $0x18] sm:$0xff] %vm425, 0.0
            %430 = vst.msk [vmem:[#allocation2 + $0x20] sm:$0xff] %vm425, 0.0
            %431 = vst.msk [vmem:[#allocation2 + $0x28] sm:$0xff] %vm425, 0.0
            %432 = vst.msk [vmem:[#allocation2 + $0x30] sm:$0xff] %vm425, 0.0
            %433 = vst.msk [vmem:[#allocation2 + $0x38] sm:$0xff] %vm425, 0.0
          $region68: #{tpu_custom_call.1} parent=63 // pred_fallthru
            _
          %v434 = vld [vmem:[#allocation2] sm:$0xff]
          %v435 = vld [vmem:[#allocation2 + $0x8] sm:$0xff]
          %v436 = vld [vmem:[#allocation2 + $0x10] sm:$0xff]
          %v437 = vld [vmem:[#allocation2 + $0x18] sm:$0xff]
          %v438 = vld [vmem:[#allocation2 + $0x20] sm:$0xff]
          %v439 = vld [vmem:[#allocation2 + $0x28] sm:$0xff]
          %v440 = vld [vmem:[#allocation2 + $0x30] sm:$0xff]
          %v441 = vld [vmem:[#allocation2 + $0x38] sm:$0xff]
          %v442 = vlaneseq
          %v443 = vshrl.u32 %v442, 7
          %v444 = vadd.s32 %v443, 8
          %v445 = vadd.s32 %v443, 16
          %v446 = vadd.s32 %v443, 24
          %v447 = vadd.s32 %v443, 32
          %v448 = vadd.s32 %v443, 40
          %v449 = vadd.s32 %v443, 48
          %v450 = vadd.s32 %v443, 56
          %v451 = vcvt.s32.f32 %v443
          %v452 = vcvt.s32.f32 %v444
          %v453 = vcvt.s32.f32 %v445
          %v454 = vcvt.s32.f32 %v446
          %v455 = vcvt.s32.f32 %v447
          %v456 = vcvt.s32.f32 %v448
          %v457 = vcvt.s32.f32 %v449
          %v458 = vcvt.s32.f32 %v450
          %v459 = vpack.c.bf16 %v451, %v451
          %v460 = vpack.c.bf16 %v452, %v452
          %v461 = vpack.c.bf16 %v453, %v453
          %v462 = vpack.c.bf16 %v454, %v454
          %v463 = vpack.c.bf16 %v455, %v455
          %v464 = vpack.c.bf16 %v456, %v456
          %v465 = vpack.c.bf16 %v457, %v457
          %v466 = vpack.c.bf16 %v458, %v458
          %v467 = vld [vmem:[%s373] sm:$0xff]
          %vm468 = vcmp.ge.f32.partialorder %v467, 0.0
          %vm469 = vcmp.le.f32.partialorder %v467, 1.0
          %vm470 = vmand %vm468, %vm469
          %v471 = vmul.f32 %v467, 64.0
          %v472 = vfloor.f32 %v471
          %v473 = vmax.f32 %v472, 0.0
          %v474 = vmin.f32 %v473, 63.0
          %v475 = vsel %vm470, %v474, -1.0
          %v476 = vpack.c.bf16 %v475, %v475
          %v478 = vpack.i.b16 %v476, %v476
          %v480 = vperm.slane %v478, 0
          %v481 = vunpack.c.l.bf16 %v459
          %v482 = vunpack.c.l.bf16 %v460
          %v483 = vunpack.c.l.bf16 %v461
          %v484 = vunpack.c.l.bf16 %v462
          %v485 = vunpack.c.l.bf16 %v463
          %v486 = vunpack.c.l.bf16 %v464
          %v487 = vunpack.c.l.bf16 %v465
          %v488 = vunpack.c.l.bf16 %v466
          %v489 = vunpack.c.l.bf16 %v480
          %vm490 = vcmp.eq.f32.partialorder %v481, %v489
          %vm491 = vcmp.eq.f32.partialorder %v482, %v489
          %vm492 = vcmp.eq.f32.partialorder %v483, %v489
          %vm493 = vcmp.eq.f32.partialorder %v484, %v489
          %vm494 = vcmp.eq.f32.partialorder %v485, %v489
          %vm495 = vcmp.eq.f32.partialorder %v486, %v489
          %vm496 = vcmp.eq.f32.partialorder %v487, %v489
          %vm497 = vcmp.eq.f32.partialorder %v488, %v489
          %v498 = vsel %vm490, 1, 0
          %v499 = vsel %vm491, 1, 0
          %v500 = vsel %vm492, 1, 0
          %v501 = vsel %vm493, 1, 0
          %v502 = vsel %vm494, 1, 0
          %v503 = vsel %vm495, 1, 0
          %v504 = vsel %vm496, 1, 0
          %v505 = vsel %vm497, 1, 0
          %v506 = vcvt.s32.f32 %v498
          %v507 = vcvt.s32.f32 %v499
          %v508 = vcvt.s32.f32 %v500
          %v509 = vcvt.s32.f32 %v501
          %v510 = vcvt.s32.f32 %v502
          %v511 = vcvt.s32.f32 %v503
          %v512 = vcvt.s32.f32 %v504
          %v513 = vcvt.s32.f32 %v505
          %v514 = vpack.c.bf16 %v507, %v506
          %v515 = vpack.c.bf16 %v509, %v508
          %v516 = vpack.c.bf16 %v511, %v510
          %v517 = vpack.c.bf16 %v513, %v512
          %v518 = vshrl.u32 %v476, 16
          %v519 = vpack.i.b16 %v518, %v518
          %v521 = vperm.slane %v519, 0
          %v522 = vunpack.c.l.bf16 %v521
          %vm523 = vcmp.eq.f32.partialorder %v481, %v522
          %vm524 = vcmp.eq.f32.partialorder %v482, %v522
          %vm525 = vcmp.eq.f32.partialorder %v483, %v522
          %vm526 = vcmp.eq.f32.partialorder %v484, %v522
          %vm527 = vcmp.eq.f32.partialorder %v485, %v522
          %vm528 = vcmp.eq.f32.partialorder %v486, %v522
          %vm529 = vcmp.eq.f32.partialorder %v487, %v522
          %vm530 = vcmp.eq.f32.partialorder %v488, %v522
          %v531 = vsel %vm523, 1, 0
          %v532 = vsel %vm524, 1, 0
          %v533 = vsel %vm525, 1, 0
          %v534 = vsel %vm526, 1, 0
          %v535 = vsel %vm527, 1, 0
          %v536 = vsel %vm528, 1, 0
          %v537 = vsel %vm529, 1, 0
          %v538 = vsel %vm530, 1, 0
          %v539 = vcvt.s32.f32 %v531
          %v540 = vcvt.s32.f32 %v532
          %v541 = vcvt.s32.f32 %v533
          %v542 = vcvt.s32.f32 %v534
          %v543 = vcvt.s32.f32 %v535
          %v544 = vcvt.s32.f32 %v536
          %v545 = vcvt.s32.f32 %v537
          %v546 = vcvt.s32.f32 %v538
          %v547 = vpack.c.bf16 %v540, %v539
          %v548 = vpack.c.bf16 %v542, %v541
          %v549 = vpack.c.bf16 %v544, %v543
          %v550 = vpack.c.bf16 %v546, %v545
          %551 = vmatpush.bf16.msra.mxu0 1065369472
          %552 = vmatpush.bf16.msra.mxu0 1065369472
          %553 = vmatpush.bf16.msra.mxu0 1065369472
          %554 = vmatpush.bf16.msra.mxu0 1065369472
          %555 = vmatpush.bf16.msra.mxu0 1065369472
          %556 = vmatpush.bf16.msra.mxu0 1065369472
          %557 = vmatpush.bf16.msra.mxu0 1065369472
          %558 = vmatpush.bf16.msra.mxu0 1065369472
          %559 = vmatmul.bf16.gmra.mxu0 %v547
          %v560 = vpop.f32.mrf.mxu0
          %v561 = vadd.f32 0.0, %v560
          %v562 = vpop.f32.mrf.mxu0
          %v563 = vadd.f32 0.0, %v562
          %564 = vmatmul.bf16.gmra.mxu0 %v548
          %v565 = vpop.f32.mrf.mxu0
          %v566 = vadd.f32 0.0, %v565
          %v567 = vpop.f32.mrf.mxu0
          %v568 = vadd.f32 0.0, %v567
          %569 = vmatmul.bf16.gmra.mxu0 %v549
          %v570 = vpop.f32.mrf.mxu0
          %v571 = vadd.f32 0.0, %v570
          %v572 = vpop.f32.mrf.mxu0
          %v573 = vadd.f32 0.0, %v572
          %574 = vmatmul.bf16.gmra.mxu0 %v550
          %v575 = vpop.f32.mrf.mxu0
          %v576 = vadd.f32 0.0, %v575
          %v577 = vpop.f32.mrf.mxu0
          %v578 = vadd.f32 0.0, %v577
          %579 = vdwg.mxu0
          %580 = vmatpush.bf16.msra.mxu0 1065369472
          %581 = vmatpush.bf16.msra.mxu0 1065369472
          %582 = vmatpush.bf16.msra.mxu0 1065369472
          %583 = vmatpush.bf16.msra.mxu0 1065369472
          %584 = vmatpush.bf16.msra.mxu0 1065369472
          %585 = vmatpush.bf16.msra.mxu0 1065369472
          %586 = vmatpush.bf16.msra.mxu0 1065369472
          %587 = vmatpush.bf16.msra.mxu0 1065369472
          %588 = vmatmul.bf16.gmra.mxu0 %v514
          %v589 = vpop.f32.mrf.mxu0
          %v590 = vadd.f32 %v561, %v589
          %v591 = vpop.f32.mrf.mxu0
          %v592 = vadd.f32 %v563, %v591
          %593 = vmatmul.bf16.gmra.mxu0 %v515
          %v594 = vpop.f32.mrf.mxu0
          %v595 = vadd.f32 %v566, %v594
          %v596 = vpop.f32.mrf.mxu0
          %v597 = vadd.f32 %v568, %v596
          %598 = vmatmul.bf16.gmra.mxu0 %v516
          %v599 = vpop.f32.mrf.mxu0
          %v600 = vadd.f32 %v571, %v599
          %v601 = vpop.f32.mrf.mxu0
          %v602 = vadd.f32 %v573, %v601
          %603 = vmatmul.bf16.gmra.mxu0 %v517
          %v604 = vpop.f32.mrf.mxu0
          %v605 = vadd.f32 %v576, %v604
          %v606 = vpop.f32.mrf.mxu0
          %v607 = vadd.f32 %v578, %v606
          %608 = vdwg.mxu0
          %v609 = vperm.slane %v478, 1
          %v610 = vunpack.c.l.bf16 %v609
          %vm611 = vcmp.eq.f32.partialorder %v481, %v610
          %vm612 = vcmp.eq.f32.partialorder %v482, %v610
          %vm613 = vcmp.eq.f32.partialorder %v483, %v610
          %vm614 = vcmp.eq.f32.partialorder %v484, %v610
          %vm615 = vcmp.eq.f32.partialorder %v485, %v610
          %vm616 = vcmp.eq.f32.partialorder %v486, %v610
          %vm617 = vcmp.eq.f32.partialorder %v487, %v610
          %vm618 = vcmp.eq.f32.partialorder %v488, %v610
          %v619 = vsel %vm611, 1, 0
          %v620 = vsel %vm612, 1, 0
          %v621 = vsel %vm613, 1, 0
          %v622 = vsel %vm614, 1, 0
          %v623 = vsel %vm615, 1, 0
          %v624 = vsel %vm616, 1, 0
          %v625 = vsel %vm617, 1, 0
          %v626 = vsel %vm618, 1, 0
          %v627 = vcvt.s32.f32 %v619
          %v628 = vcvt.s32.f32 %v620
          %v629 = vcvt.s32.f32 %v621
          %v630 = vcvt.s32.f32 %v622
          %v631 = vcvt.s32.f32 %v623
          %v632 = vcvt.s32.f32 %v624
          %v633 = vcvt.s32.f32 %v625
          %v634 = vcvt.s32.f32 %v626
          %v635 = vpack.c.bf16 %v628, %v627
          %v636 = vpack.c.bf16 %v630, %v629
          %v637 = vpack.c.bf16 %v632, %v631
          %v638 = vpack.c.bf16 %v634, %v633
          %639 = vmatpush.bf16.msra.mxu0 1065369472
          %640 = vmatpush.bf16.msra.mxu0 1065369472
          %641 = vmatpush.bf16.msra.mxu0 1065369472
          %642 = vmatpush.bf16.msra.mxu0 1065369472
          %643 = vmatpush.bf16.msra.mxu0 1065369472
          %644 = vmatpush.bf16.msra.mxu0 1065369472
          %645 = vmatpush.bf16.msra.mxu0 1065369472
          %646 = vmatpush.bf16.msra.mxu0 1065369472
          %647 = vmatmul.bf16.gmra.mxu0 %v635
          %v648 = vpop.f32.mrf.mxu0
          %v649 = vadd.f32 0.0, %v648
          %v650 = vpop.f32.mrf.mxu0
          %v651 = vadd.f32 0.0, %v650
          %652 = vmatmul.bf16.gmra.mxu0 %v636
          %v653 = vpop.f32.mrf.mxu0
          %v654 = vadd.f32 0.0, %v653
          %v655 = vpop.f32.mrf.mxu0
          %v656 = vadd.f32 0.0, %v655
          %657 = vmatmul.bf16.gmra.mxu0 %v637
          %v658 = vpop.f32.mrf.mxu0
          %v659 = vadd.f32 0.0, %v658
          %v660 = vpop.f32.mrf.mxu0
          %v661 = vadd.f32 0.0, %v660
          %662 = vmatmul.bf16.gmra.mxu0 %v638
          %v663 = vpop.f32.mrf.mxu0
          %v664 = vadd.f32 0.0, %v663
          %v665 = vpop.f32.mrf.mxu0
          %v666 = vadd.f32 0.0, %v665
          %667 = vdwg.mxu0
          %v668 = vadd.f32 %v590, %v649
          %v669 = vadd.f32 %v592, %v651
          %v670 = vadd.f32 %v595, %v654
          %v671 = vadd.f32 %v597, %v656
          %v672 = vadd.f32 %v600, %v659
          %v673 = vadd.f32 %v602, %v661
          %v674 = vadd.f32 %v605, %v664
          %v675 = vadd.f32 %v607, %v666
          %v676 = vperm.slane %v519, 1
          %v677 = vunpack.c.l.bf16 %v676
          %vm678 = vcmp.eq.f32.partialorder %v481, %v677
          %vm679 = vcmp.eq.f32.partialorder %v482, %v677
          %vm680 = vcmp.eq.f32.partialorder %v483, %v677
          %vm681 = vcmp.eq.f32.partialorder %v484, %v677
          %vm682 = vcmp.eq.f32.partialorder %v485, %v677
          %vm683 = vcmp.eq.f32.partialorder %v486, %v677
          %vm684 = vcmp.eq.f32.partialorder %v487, %v677
          %vm685 = vcmp.eq.f32.partialorder %v488, %v677
          %v686 = vsel %vm678, 1, 0
          %v687 = vsel %vm679, 1, 0
          %v688 = vsel %vm680, 1, 0
          %v689 = vsel %vm681, 1, 0
          %v690 = vsel %vm682, 1, 0
          %v691 = vsel %vm683, 1, 0
          %v692 = vsel %vm684, 1, 0
          %v693 = vsel %vm685, 1, 0
          %v694 = vcvt.s32.f32 %v686
          %v695 = vcvt.s32.f32 %v687
          %v696 = vcvt.s32.f32 %v688
          %v697 = vcvt.s32.f32 %v689
          %v698 = vcvt.s32.f32 %v690
          %v699 = vcvt.s32.f32 %v691
          %v700 = vcvt.s32.f32 %v692
          %v701 = vcvt.s32.f32 %v693
          %v702 = vpack.c.bf16 %v695, %v694
          %v703 = vpack.c.bf16 %v697, %v696
          %v704 = vpack.c.bf16 %v699, %v698
          %v705 = vpack.c.bf16 %v701, %v700
          %706 = vmatpush.bf16.msra.mxu0 1065369472
          %707 = vmatpush.bf16.msra.mxu0 1065369472
          %708 = vmatpush.bf16.msra.mxu0 1065369472
          %709 = vmatpush.bf16.msra.mxu0 1065369472
          %710 = vmatpush.bf16.msra.mxu0 1065369472
          %711 = vmatpush.bf16.msra.mxu0 1065369472
          %712 = vmatpush.bf16.msra.mxu0 1065369472
          %713 = vmatpush.bf16.msra.mxu0 1065369472
          %714 = vmatmul.bf16.gmra.mxu0 %v702
          %v715 = vpop.f32.mrf.mxu0
          %v716 = vadd.f32 0.0, %v715
          %v717 = vpop.f32.mrf.mxu0
          %v718 = vadd.f32 0.0, %v717
          %719 = vmatmul.bf16.gmra.mxu0 %v703
          %v720 = vpop.f32.mrf.mxu0
          %v721 = vadd.f32 0.0, %v720
          %v722 = vpop.f32.mrf.mxu0
          %v723 = vadd.f32 0.0, %v722
          %724 = vmatmul.bf16.gmra.mxu0 %v704
          %v725 = vpop.f32.mrf.mxu0
          %v726 = vadd.f32 0.0, %v725
          %v727 = vpop.f32.mrf.mxu0
          %v728 = vadd.f32 0.0, %v727
          %729 = vmatmul.bf16.gmra.mxu0 %v705
          %v730 = vpop.f32.mrf.mxu0
          %v731 = vadd.f32 0.0, %v730
          %v732 = vpop.f32.mrf.mxu0
          %v733 = vadd.f32 0.0, %v732
          %734 = vdwg.mxu0
          %v735 = vadd.f32 %v668, %v716
          %v736 = vadd.f32 %v669, %v718
          %v737 = vadd.f32 %v670, %v721
          %v738 = vadd.f32 %v671, %v723
          %v739 = vadd.f32 %v672, %v726
          %v740 = vadd.f32 %v673, %v728
          %v741 = vadd.f32 %v674, %v731
          %v742 = vadd.f32 %v675, %v733
          %v743 = vperm.slane %v478, 2
          %v744 = vunpack.c.l.bf16 %v743
          %vm745 = vcmp.eq.f32.partialorder %v481, %v744
          %vm746 = vcmp.eq.f32.partialorder %v482, %v744
          %vm747 = vcmp.eq.f32.partialorder %v483, %v744
          %vm748 = vcmp.eq.f32.partialorder %v484, %v744
          %vm749 = vcmp.eq.f32.partialorder %v485, %v744
          %vm750 = vcmp.eq.f32.partialorder %v486, %v744
          %vm751 = vcmp.eq.f32.partialorder %v487, %v744
          %vm752 = vcmp.eq.f32.partialorder %v488, %v744
          %v753 = vsel %vm745, 1, 0
          %v754 = vsel %vm746, 1, 0
          %v755 = vsel %vm747, 1, 0
          %v756 = vsel %vm748, 1, 0
          %v757 = vsel %vm749, 1, 0
          %v758 = vsel %vm750, 1, 0
          %v759 = vsel %vm751, 1, 0
          %v760 = vsel %vm752, 1, 0
          %v761 = vcvt.s32.f32 %v753
          %v762 = vcvt.s32.f32 %v754
          %v763 = vcvt.s32.f32 %v755
          %v764 = vcvt.s32.f32 %v756
          %v765 = vcvt.s32.f32 %v757
          %v766 = vcvt.s32.f32 %v758
          %v767 = vcvt.s32.f32 %v759
          %v768 = vcvt.s32.f32 %v760
          %v769 = vpack.c.bf16 %v762, %v761
          %v770 = vpack.c.bf16 %v764, %v763
          %v771 = vpack.c.bf16 %v766, %v765
          %v772 = vpack.c.bf16 %v768, %v767
          %773 = vmatpush.bf16.msra.mxu0 1065369472
          %774 = vmatpush.bf16.msra.mxu0 1065369472
          %775 = vmatpush.bf16.msra.mxu0 1065369472
          %776 = vmatpush.bf16.msra.mxu0 1065369472
          %777 = vmatpush.bf16.msra.mxu0 1065369472
          %778 = vmatpush.bf16.msra.mxu0 1065369472
          %779 = vmatpush.bf16.msra.mxu0 1065369472
          %780 = vmatpush.bf16.msra.mxu0 1065369472
          %781 = vmatmul.bf16.gmra.mxu0 %v769
          %v782 = vpop.f32.mrf.mxu0
          %v783 = vadd.f32 0.0, %v782
          %v784 = vpop.f32.mrf.mxu0
          %v785 = vadd.f32 0.0, %v784
          %786 = vmatmul.bf16.gmra.mxu0 %v770
          %v787 = vpop.f32.mrf.mxu0
          %v788 = vadd.f32 0.0, %v787
          %v789 = vpop.f32.mrf.mxu0
          %v790 = vadd.f32 0.0, %v789
          %791 = vmatmul.bf16.gmra.mxu0 %v771
          %v792 = vpop.f32.mrf.mxu0
          %v793 = vadd.f32 0.0, %v792
          %v794 = vpop.f32.mrf.mxu0
          %v795 = vadd.f32 0.0, %v794
          %796 = vmatmul.bf16.gmra.mxu0 %v772
          %v797 = vpop.f32.mrf.mxu0
          %v798 = vadd.f32 0.0, %v797
          %v799 = vpop.f32.mrf.mxu0
          %v800 = vadd.f32 0.0, %v799
          %801 = vdwg.mxu0
          %v802 = vadd.f32 %v735, %v783
          %v803 = vadd.f32 %v736, %v785
          %v804 = vadd.f32 %v737, %v788
          %v805 = vadd.f32 %v738, %v790
          %v806 = vadd.f32 %v739, %v793
          %v807 = vadd.f32 %v740, %v795
          %v808 = vadd.f32 %v741, %v798
          %v809 = vadd.f32 %v742, %v800
          %v810 = vperm.slane %v519, 2
          %v811 = vunpack.c.l.bf16 %v810
          %vm812 = vcmp.eq.f32.partialorder %v481, %v811
          %vm813 = vcmp.eq.f32.partialorder %v482, %v811
          %vm814 = vcmp.eq.f32.partialorder %v483, %v811
          %vm815 = vcmp.eq.f32.partialorder %v484, %v811
          %vm816 = vcmp.eq.f32.partialorder %v485, %v811
          %vm817 = vcmp.eq.f32.partialorder %v486, %v811
          %vm818 = vcmp.eq.f32.partialorder %v487, %v811
          %vm819 = vcmp.eq.f32.partialorder %v488, %v811
          %v820 = vsel %vm812, 1, 0
          %v821 = vsel %vm813, 1, 0
          %v822 = vsel %vm814, 1, 0
          %v823 = vsel %vm815, 1, 0
          %v824 = vsel %vm816, 1, 0
          %v825 = vsel %vm817, 1, 0
          %v826 = vsel %vm818, 1, 0
          %v827 = vsel %vm819, 1, 0
          %v828 = vcvt.s32.f32 %v820
          %v829 = vcvt.s32.f32 %v821
          %v830 = vcvt.s32.f32 %v822
          %v831 = vcvt.s32.f32 %v823
          %v832 = vcvt.s32.f32 %v824
          %v833 = vcvt.s32.f32 %v825
          %v834 = vcvt.s32.f32 %v826
          %v835 = vcvt.s32.f32 %v827
          %v836 = vpack.c.bf16 %v829, %v828
          %v837 = vpack.c.bf16 %v831, %v830
          %v838 = vpack.c.bf16 %v833, %v832
          %v839 = vpack.c.bf16 %v835, %v834
          %840 = vmatpush.bf16.msra.mxu0 1065369472
          %841 = vmatpush.bf16.msra.mxu0 1065369472
          %842 = vmatpush.bf16.msra.mxu0 1065369472
          %843 = vmatpush.bf16.msra.mxu0 1065369472
          %844 = vmatpush.bf16.msra.mxu0 1065369472
          %845 = vmatpush.bf16.msra.mxu0 1065369472
          %846 = vmatpush.bf16.msra.mxu0 1065369472
          %847 = vmatpush.bf16.msra.mxu0 1065369472
          %848 = vmatmul.bf16.gmra.mxu0 %v836
          %v849 = vpop.f32.mrf.mxu0
          %v850 = vadd.f32 0.0, %v849
          %v851 = vpop.f32.mrf.mxu0
          %v852 = vadd.f32 0.0, %v851
          %853 = vmatmul.bf16.gmra.mxu0 %v837
          %v854 = vpop.f32.mrf.mxu0
          %v855 = vadd.f32 0.0, %v854
          %v856 = vpop.f32.mrf.mxu0
          %v857 = vadd.f32 0.0, %v856
          %858 = vmatmul.bf16.gmra.mxu0 %v838
          %v859 = vpop.f32.mrf.mxu0
          %v860 = vadd.f32 0.0, %v859
          %v861 = vpop.f32.mrf.mxu0
          %v862 = vadd.f32 0.0, %v861
          %863 = vmatmul.bf16.gmra.mxu0 %v839
          %v864 = vpop.f32.mrf.mxu0
          %v865 = vadd.f32 0.0, %v864
          %v866 = vpop.f32.mrf.mxu0
          %v867 = vadd.f32 0.0, %v866
          %868 = vdwg.mxu0
          %v869 = vadd.f32 %v802, %v850
          %v870 = vadd.f32 %v803, %v852
          %v871 = vadd.f32 %v804, %v855
          %v872 = vadd.f32 %v805, %v857
          %v873 = vadd.f32 %v806, %v860
          %v874 = vadd.f32 %v807, %v862
          %v875 = vadd.f32 %v808, %v865
          %v876 = vadd.f32 %v809, %v867
          %v877 = vperm.slane %v478, 3
          %v878 = vunpack.c.l.bf16 %v877
          %vm879 = vcmp.eq.f32.partialorder %v481, %v878
          %vm880 = vcmp.eq.f32.partialorder %v482, %v878
          %vm881 = vcmp.eq.f32.partialorder %v483, %v878
          %vm882 = vcmp.eq.f32.partialorder %v484, %v878
          %vm883 = vcmp.eq.f32.partialorder %v485, %v878
          %vm884 = vcmp.eq.f32.partialorder %v486, %v878
          %vm885 = vcmp.eq.f32.partialorder %v487, %v878
          %vm886 = vcmp.eq.f32.partialorder %v488, %v878
          %v887 = vsel %vm879, 1, 0
          %v888 = vsel %vm880, 1, 0
          %v889 = vsel %vm881, 1, 0
          %v890 = vsel %vm882, 1, 0
          %v891 = vsel %vm883, 1, 0
          %v892 = vsel %vm884, 1, 0
          %v893 = vsel %vm885, 1, 0
          %v894 = vsel %vm886, 1, 0
          %v895 = vcvt.s32.f32 %v887
          %v896 = vcvt.s32.f32 %v888
          %v897 = vcvt.s32.f32 %v889
          %v898 = vcvt.s32.f32 %v890
          %v899 = vcvt.s32.f32 %v891
          %v900 = vcvt.s32.f32 %v892
          %v901 = vcvt.s32.f32 %v893
          %v902 = vcvt.s32.f32 %v894
          %v903 = vpack.c.bf16 %v896, %v895
          %v904 = vpack.c.bf16 %v898, %v897
          %v905 = vpack.c.bf16 %v900, %v899
          %v906 = vpack.c.bf16 %v902, %v901
          %907 = vmatpush.bf16.msra.mxu0 1065369472
          %908 = vmatpush.bf16.msra.mxu0 1065369472
          %909 = vmatpush.bf16.msra.mxu0 1065369472
          %910 = vmatpush.bf16.msra.mxu0 1065369472
          %911 = vmatpush.bf16.msra.mxu0 1065369472
          %912 = vmatpush.bf16.msra.mxu0 1065369472
          %913 = vmatpush.bf16.msra.mxu0 1065369472
          %914 = vmatpush.bf16.msra.mxu0 1065369472
          %915 = vmatmul.bf16.gmra.mxu0 %v903
          %v916 = vpop.f32.mrf.mxu0
          %v917 = vadd.f32 0.0, %v916
          %v918 = vpop.f32.mrf.mxu0
          %v919 = vadd.f32 0.0, %v918
          %920 = vmatmul.bf16.gmra.mxu0 %v904
          %v921 = vpop.f32.mrf.mxu0
          %v922 = vadd.f32 0.0, %v921
          %v923 = vpop.f32.mrf.mxu0
          %v924 = vadd.f32 0.0, %v923
          %925 = vmatmul.bf16.gmra.mxu0 %v905
          %v926 = vpop.f32.mrf.mxu0
          %v927 = vadd.f32 0.0, %v926
          %v928 = vpop.f32.mrf.mxu0
          %v929 = vadd.f32 0.0, %v928
          %930 = vmatmul.bf16.gmra.mxu0 %v906
          %v931 = vpop.f32.mrf.mxu0
          %v932 = vadd.f32 0.0, %v931
          %v933 = vpop.f32.mrf.mxu0
          %v934 = vadd.f32 0.0, %v933
          %935 = vdwg.mxu0
          %v936 = vadd.f32 %v869, %v917
          %v937 = vadd.f32 %v870, %v919
          %v938 = vadd.f32 %v871, %v922
          %v939 = vadd.f32 %v872, %v924
          %v940 = vadd.f32 %v873, %v927
          %v941 = vadd.f32 %v874, %v929
          %v942 = vadd.f32 %v875, %v932
          %v943 = vadd.f32 %v876, %v934
          %v944 = vperm.slane %v519, 3
          %v945 = vunpack.c.l.bf16 %v944
          %vm946 = vcmp.eq.f32.partialorder %v481, %v945
          %vm947 = vcmp.eq.f32.partialorder %v482, %v945
          %vm948 = vcmp.eq.f32.partialorder %v483, %v945
          %vm949 = vcmp.eq.f32.partialorder %v484, %v945
          %vm950 = vcmp.eq.f32.partialorder %v485, %v945
          %vm951 = vcmp.eq.f32.partialorder %v486, %v945
          %vm952 = vcmp.eq.f32.partialorder %v487, %v945
          %vm953 = vcmp.eq.f32.partialorder %v488, %v945
          %v954 = vsel %vm946, 1, 0
          %v955 = vsel %vm947, 1, 0
          %v956 = vsel %vm948, 1, 0
          %v957 = vsel %vm949, 1, 0
          %v958 = vsel %vm950, 1, 0
          %v959 = vsel %vm951, 1, 0
          %v960 = vsel %vm952, 1, 0
          %v961 = vsel %vm953, 1, 0
          %v962 = vcvt.s32.f32 %v954
          %v963 = vcvt.s32.f32 %v955
          %v964 = vcvt.s32.f32 %v956
          %v965 = vcvt.s32.f32 %v957
          %v966 = vcvt.s32.f32 %v958
          %v967 = vcvt.s32.f32 %v959
          %v968 = vcvt.s32.f32 %v960
          %v969 = vcvt.s32.f32 %v961
          %v970 = vpack.c.bf16 %v963, %v962
          %v971 = vpack.c.bf16 %v965, %v964
          %v972 = vpack.c.bf16 %v967, %v966
          %v973 = vpack.c.bf16 %v969, %v968
          %974 = vmatpush.bf16.msra.mxu0 1065369472
          %975 = vmatpush.bf16.msra.mxu0 1065369472
          %976 = vmatpush.bf16.msra.mxu0 1065369472
          %977 = vmatpush.bf16.msra.mxu0 1065369472
          %978 = vmatpush.bf16.msra.mxu0 1065369472
          %979 = vmatpush.bf16.msra.mxu0 1065369472
          %980 = vmatpush.bf16.msra.mxu0 1065369472
          %981 = vmatpush.bf16.msra.mxu0 1065369472
          %982 = vmatmul.bf16.gmra.mxu0 %v970
          %v983 = vpop.f32.mrf.mxu0
          %v984 = vadd.f32 0.0, %v983
          %v985 = vpop.f32.mrf.mxu0
          %v986 = vadd.f32 0.0, %v985
          %987 = vmatmul.bf16.gmra.mxu0 %v971
          %v988 = vpop.f32.mrf.mxu0
          %v989 = vadd.f32 0.0, %v988
          %v990 = vpop.f32.mrf.mxu0
          %v991 = vadd.f32 0.0, %v990
          %992 = vmatmul.bf16.gmra.mxu0 %v972
          %v993 = vpop.f32.mrf.mxu0
          %v994 = vadd.f32 0.0, %v993
          %v995 = vpop.f32.mrf.mxu0
          %v996 = vadd.f32 0.0, %v995
          %997 = vmatmul.bf16.gmra.mxu0 %v973
          %v998 = vpop.f32.mrf.mxu0
          %v999 = vadd.f32 0.0, %v998
          %v1000 = vpop.f32.mrf.mxu0
          %v1001 = vadd.f32 0.0, %v1000
          %1002 = vdwg.mxu0
          %v1003 = vadd.f32 %v936, %v984
          %v1004 = vadd.f32 %v937, %v986
          %v1005 = vadd.f32 %v938, %v989
          %v1006 = vadd.f32 %v939, %v991
          %v1007 = vadd.f32 %v940, %v994
          %v1008 = vadd.f32 %v941, %v996
          %v1009 = vadd.f32 %v942, %v999
          %v1010 = vadd.f32 %v943, %v1001
          %v1011 = vadd.f32 %v434, %v1003
          %v1012 = vadd.f32 %v435, %v1004
          %v1013 = vadd.f32 %v436, %v1005
          %v1014 = vadd.f32 %v437, %v1006
          %v1015 = vadd.f32 %v438, %v1007
          %v1016 = vadd.f32 %v439, %v1008
          %v1017 = vadd.f32 %v440, %v1009
          %v1018 = vadd.f32 %v441, %v1010
          %vm1019 = vcmask 64512
          %1020 = vst.msk [vmem:[#allocation2] sm:$0xff] %vm1019, %v1011
          %1021 = vst.msk [vmem:[#allocation2 + $0x8] sm:$0xff] %vm1019, %v1012
          %1022 = vst.msk [vmem:[#allocation2 + $0x10] sm:$0xff] %vm1019, %v1013
          %1023 = vst.msk [vmem:[#allocation2 + $0x18] sm:$0xff] %vm1019, %v1014
          %1024 = vst.msk [vmem:[#allocation2 + $0x20] sm:$0xff] %vm1019, %v1015
          %1025 = vst.msk [vmem:[#allocation2 + $0x28] sm:$0xff] %vm1019, %v1016
          %1026 = vst.msk [vmem:[#allocation2 + $0x30] sm:$0xff] %vm1019, %v1017
          %1027 = vst.msk [vmem:[#allocation2 + $0x38] sm:$0xff] %vm1019, %v1018
          // Predicated region
          $region69: #{tpu_custom_call.1} parent=63 // pred_check
            %p1028 = pneg %p421
          $region70: #{tpu_custom_call.1} parent=63 // pred_check_branch
            %1030 = sbr.rel (%p1028) target = $region72
          $region71: #{tpu_custom_call.1} parent=63 // pred_region
            %v1031 = vld [vmem:[#allocation2] sm:$0xff]
            %v1032 = vld [vmem:[#allocation2 + $0x8] sm:$0xff]
            %v1033 = vld [vmem:[#allocation2 + $0x10] sm:$0xff]
            %v1034 = vld [vmem:[#allocation2 + $0x18] sm:$0xff]
            %v1035 = vld [vmem:[#allocation2 + $0x20] sm:$0xff]
            %v1036 = vld [vmem:[#allocation2 + $0x28] sm:$0xff]
            %v1037 = vld [vmem:[#allocation2 + $0x30] sm:$0xff]
            %v1038 = vld [vmem:[#allocation2 + $0x38] sm:$0xff]
            %1039 = vxpose.xlu0.b32.start [1/16] %v1031, 128
            %1040 = vxpose.xlu0.b32.cont [2/16] %v1032, 128
            %1041 = vxpose.xlu0.b32.cont [3/16] %v1033, 128
            %1042 = vxpose.xlu0.b32.cont [4/16] %v1034, 128
            %1043 = vxpose.xlu0.b32.cont [5/16] %v1035, 128
            %1044 = vxpose.xlu0.b32.cont [6/16] %v1036, 128
            %1045 = vxpose.xlu0.b32.cont [7/16] %v1037, 128
            %1046 = vxpose.xlu0.b32.cont [8/16] %v1038, 128
            %1047 = vxpose.xlu0.b32.cont [9/16] 0.0, 128
            %1048 = vxpose.xlu0.b32.cont [10/16] 0.0, 128
            %1049 = vxpose.xlu0.b32.cont [11/16] 0.0, 128
            %1050 = vxpose.xlu0.b32.cont [12/16] 0.0, 128
            %1051 = vxpose.xlu0.b32.cont [13/16] 0.0, 128
            %1052 = vxpose.xlu0.b32.cont [14/16] 0.0, 128
            %1053 = vxpose.xlu0.b32.cont [15/16] 0.0, 128
            %1054 = vxpose.xlu0.b32.end [16/16] 0.0, 128
            %v1055 = vpop.trf.xlu0
            %v1056 = vpop.trf.xlu0
            %v1057 = vpop.trf.xlu0
            %v1058 = vpop.trf.xlu0
            %v1059 = vpop.trf.xlu0
            %v1060 = vpop.trf.xlu0
            %v1061 = vpop.trf.xlu0
            %v1062 = vpop.trf.xlu0
            %v1063 = vpop.trf.xlu0
            %v1064 = vpop.trf.xlu0
            %v1065 = vpop.trf.xlu0
            %v1066 = vpop.trf.xlu0
            %v1067 = vpop.trf.xlu0
            %v1068 = vpop.trf.xlu0
            %v1069 = vpop.trf.xlu0
            %v1070 = vpop.trf.xlu0
            %v1071 = vlaneseq
            %v1072 = vand.u32 %v1071, 127
            %vm1073 = vcmask 516096
            %v1074 = vsel %vm1073, %v1055, -inf
            %1075 = vmax.xlane.f32.xlu0 %v1074
            %v1076 = vpop.xlane.xlu0 %1075
            %v1077 = vmul.f32 %v1076, 0.5
            %vm1078 = vcmp.eq.f32.partialorder %v1055, %v1076
            %v1079 = vsel %vm1078, %v1072, 64
            %v1080 = vsel %vm1073, %v1079, 2147483647
            %v1081 = vand.u32 %v1080, 65535
            %v1082 = vshra.s32 %v1080, 16
            %v1083 = vcvt.s32.f32 %v1081
            %v1084 = vcvt.s32.f32 %v1082
            %1085 = vmin.xlane.f32.xlu0 %v1084
            %v1086 = vpop.xlane.xlu0 %1085
            %vm1087 = vcmp.eq.f32.partialorder %v1084, %v1086
            %v1088 = vsel %vm1087, %v1083, inf
            %1089 = vmin.xlane.f32.xlu0 %v1088
            %v1090 = vpop.xlane.xlu0 %1089
            %v1091 = vcvt.f32.s32 %v1090
            %v1092 = vcvt.f32.s32 %v1086
            %v1093 = vshll.u32 %v1092, 16
            %v1094 = vadd.s32 %v1093, %v1091
            %vm1095 = vcmp.lt.s32.totalorder %v1072, %v1094
            %vm1096 = vcmp.gt.f32.partialorder %v1055, %v1077
            %vm1097 = vmor %vm1095, %vm1096
            %v1098 = vsel %vm1097, 64, %v1072
            %v1099 = vsel %vm1073, %v1098, 2147483647
            %v1100 = vand.u32 %v1099, 65535
            %v1101 = vshra.s32 %v1099, 16
            %v1102 = vcvt.s32.f32 %v1100
            %v1103 = vcvt.s32.f32 %v1101
            %1104 = vmin.xlane.f32.xlu0 %v1103
            %v1105 = vpop.xlane.xlu0 %1104
            %vm1106 = vcmp.eq.f32.partialorder %v1103, %v1105
            %v1107 = vsel %vm1106, %v1102, inf
            %1108 = vmin.xlane.f32.xlu0 %v1107
            %v1109 = vpop.xlane.xlu0 %1108
            %v1110 = vcvt.f32.s32 %v1109
            %v1111 = vcvt.f32.s32 %v1105
            %v1112 = vshll.u32 %v1111, 16
            %v1113 = vadd.s32 %v1112, %v1110
            %vm1114 = vcmp.ge.s32.totalorder %v1113, 64
            %v1115 = vsel %vm1114, 0, %v1113
            %v1116 = vcvt.s32.f32 %v1115
            %v1117 = vrcp.pop 64.0
            %v1118 = vmul.f32 64.0, %v1117
            %v1119 = vsub.f32 1.0, %v1118
            %v1120 = vmul.f32 %v1117, %v1119
            %v1121 = vadd.f32 %v1117, %v1120
            %vm1122 = vweird.f32 %v1117
            %v1123 = vsel %vm1122, %v1117, %v1121
            %v1124 = vmul.f32 %v1116, %v1123
            %1125 = vst [vmem:[%s414] sm:$0x1] %v1124
            %v1126 = vld [vmem:[%s1] sm:$0xff]
            %v1127 = vld [vmem:[%s1 + $0x8] sm:$0xff]
            %v1128 = vld [vmem:[%s1 + $0x10] sm:$0xff]
            %v1129 = vld [vmem:[%s1 + $0x18] sm:$0xff]
            %v1130 = vld [vmem:[%s1 + $0x20] sm:$0xff]
            %v1131 = vld [vmem:[%s1 + $0x28] sm:$0xff]
            %v1132 = vld [vmem:[%s1 + $0x30] sm:$0xff]
            %v1133 = vld [vmem:[%s1 + $0x38] sm:$0xff]
            %v1134 = vld [vmem:[%s2] sm:$0x1]
            %v1136 = vperm.slane %v1134, 0
            %vm1138 = vcmask 523264
            %v1140 = vsel %vm1138, %v1055, 0
            %1142 = vmatpush.msra.mxu0 0.0
            %1143 = vmatpush.msra.mxu0 0.0
            %1144 = vmatpush.msra.mxu0 0.0
            %1145 = vmatpush.msra.mxu0 0.0
            %1146 = vmatpush.msra.mxu0 0.0
            %1147 = vmatpush.msra.mxu0 0.0
            %1148 = vmatpush.msra.mxu0 0.0
            %1149 = vmatpush.msra.mxu0 0.0
            %1150 = vmatpush.msra.mxu0 %v1133
            %1151 = vmatpush.msra.mxu0 %v1132
            %1152 = vmatpush.msra.mxu0 %v1131
            %1153 = vmatpush.msra.mxu0 %v1130
            %1154 = vmatpush.msra.mxu0 %v1129
            %1155 = vmatpush.msra.mxu0 %v1128
            %1156 = vmatpush.msra.mxu0 %v1127
            %1157 = vmatpush.msra.mxu0 %v1126
            %1158 = vmatmul.f32.gmra.mxu0 %v1140
            %v1159 = vpop.f32.mrf.mxu0
            %v1160 = vadd.f32 %v1136, %v1159
            %1161 = vdwg.mxu0
            %v1162 = vmax.f32 %v1160, 0.0
            %v1163 = vld [vmem:[%s3] sm:$0xff]
            %v1164 = vld [vmem:[%s3 + $0x8] sm:$0xff]
            %v1165 = vld [vmem:[%s3 + $0x10] sm:$0xff]
            %v1166 = vld [vmem:[%s3 + $0x18] sm:$0xff]
            %v1167 = vld [vmem:[%s4] sm:$0x1]
            %v1169 = vperm.slane %v1167, 0
            %vm1171 = vcmask 261120
            %v1173 = vsel %vm1171, %v1162, 0
            %1175 = vmatpush.msra.mxu0 0.0
            %1176 = vmatpush.msra.mxu0 0.0
            %1177 = vmatpush.msra.mxu0 0.0
            %1178 = vmatpush.msra.mxu0 0.0
            %1179 = vmatpush.msra.mxu0 0.0
            %1180 = vmatpush.msra.mxu0 0.0
            %1181 = vmatpush.msra.mxu0 0.0
            %1182 = vmatpush.msra.mxu0 0.0
            %1183 = vmatpush.msra.mxu0 0.0
            %1184 = vmatpush.msra.mxu0 0.0
            %1185 = vmatpush.msra.mxu0 0.0
            %1186 = vmatpush.msra.mxu0 0.0
            %1187 = vmatpush.msra.mxu0 %v1166
            %1188 = vmatpush.msra.mxu0 %v1165
            %1189 = vmatpush.msra.mxu0 %v1164
            %1190 = vmatpush.msra.mxu0 %v1163
            %1191 = vmatmul.f32.gmra.mxu0 %v1173
            %v1192 = vpop.f32.mrf.mxu0
            %v1193 = vadd.f32 %v1169, %v1192
            %1194 = vdwg.mxu0
            %v1195 = vmax.f32 %v1193, 0.0
            %v1196 = vld [vmem:[%s5] sm:$0xff]
            %v1197 = vld [vmem:[%s5 + $0x8] sm:$0xff]
            %v1198 = vld [vmem:[%s5 + $0x10] sm:$0xff]
            %v1199 = vld [vmem:[%s5 + $0x18] sm:$0xff]
            %v1200 = vld [vmem:[%s5 + $0x20] sm:$0xff]
            %v1201 = vld [vmem:[%s5 + $0x28] sm:$0xff]
            %v1202 = vld [vmem:[%s5 + $0x30] sm:$0xff]
            %v1203 = vld [vmem:[%s5 + $0x38] sm:$0xff]
            %v1204 = vld [vmem:[%s6] sm:$0x1]
            %v1206 = vperm.slane %v1204, 0
            %v1209 = vsel %vm1138, %v1195, 0
            %1211 = vmatpush.msra.mxu0 0.0
            %1212 = vmatpush.msra.mxu0 0.0
            %1213 = vmatpush.msra.mxu0 0.0
            %1214 = vmatpush.msra.mxu0 0.0
            %1215 = vmatpush.msra.mxu0 0.0
            %1216 = vmatpush.msra.mxu0 0.0
            %1217 = vmatpush.msra.mxu0 0.0
            %1218 = vmatpush.msra.mxu0 0.0
            %1219 = vmatpush.msra.mxu0 %v1203
            %1220 = vmatpush.msra.mxu0 %v1202
            %1221 = vmatpush.msra.mxu0 %v1201
            %1222 = vmatpush.msra.mxu0 %v1200
            %1223 = vmatpush.msra.mxu0 %v1199
            %1224 = vmatpush.msra.mxu0 %v1198
            %1225 = vmatpush.msra.mxu0 %v1197
            %1226 = vmatpush.msra.mxu0 %v1196
            %1227 = vmatmul.f32.gmra.mxu0 %v1209
            %v1228 = vpop.f32.mrf.mxu0
            %v1229 = vadd.f32 %v1206, %v1228
            %1230 = vdwg.mxu0
            %v1231 = vmax.f32 %v1229, 0.0
            %v1232 = vld [vmem:[%s7] sm:$0x1]
            %v1234 = vperm.slane %v1232, 0
            %v1236 = vmul.f32 %v1231, %v1234
            %1237 = vadd.xlane.f32.xlu0 %v1236
            %v1238 = vpop.xlane.xlu0 %1237
            %v1239 = vld [vmem:[#allocation4] sm:$0x1]
            %v1241 = vperm.slane %v1239, 0
            %v1243 = vadd.f32 %v1238, %v1241
            %s1245 = vtos %v1243
            %v1246 = vstv %s1245
            %1248 = vst [vmem:[#allocation3] sm:$0xff] %v1246
          $region72: #{tpu_custom_call.1} parent=63 // pred_fallthru
            _
        $region64: #{tpu_custom_call.1} parent=55 // pred_fallthru
          _
        %p1249 = scmp.eq.s32.totalorder %s39, 1
        // Predicated region
        $region73: #{tpu_custom_call.1} parent=55 // pred_check
          %p1250 = pneg %p1249
        $region74: #{tpu_custom_call.1} parent=55 // pred_check_branch
          %1252 = sbr.rel (%p1250) target = $region76
        $region75: #{tpu_custom_call.1} parent=55 // pred_region
          %v1253 = vld [vmem:[#allocation3] sm:$0xff]
          %v1254 = vld [vmem:[%s373] sm:$0xff]
          %v1255 = vmul.f32 %v1254, %v1253
          %1256 = vst [vmem:[%s408] sm:$0xff] %v1255
        $region76: #{tpu_custom_call.1} parent=55 // pred_fallthru
          _
        %s1257 = sand.u32 %s260, 1
        %s1258 = scalar_lea.sflag [#allocation7], %s1257
        %s1259 = sand.u32 %s260, 1
        %s1260 = smul.addr %s1259, 8
        %s1261 = scalar_lea.vmem [#allocation8], %s1260
        %s1262 = sand.u32 %s286, 1
        %s1263 = scalar_lea.sflag [#allocation10], %s1262
        %s1264 = sand.u32 %s286, 1
        %s1265 = scalar_lea.vmem [#allocation9], %s1264
        // Predicated region
        $region77: #{tpu_custom_call.1} parent=55 // pred_check
          %p1266 = pneg %p270
        $region78: #{tpu_custom_call.1} parent=55 // pred_check_branch
          %1268 = sbr.rel (%p1266) target = $region80
        $region79: #{tpu_custom_call.1} parent=55 // pred_region
          %s1269 = smul.u32 %s40, %s39
          %1271 = vsyncadd %s1258, 0
          %s1272 = sadd.s32 %s1269, %s38
          %s1273 = smul.addr %s1272, 8
          %s1274 = scalar_lea.hbm %s9, %s1273
          %s1276 = sshll.u32 %s1261, 4
          %s1277 = int_to_ptr.vmem [resolvable:$true] %s1276
          %s1278 = sshll.u32 %s1274, 4
          %s1279 = int_to_ptr.hbm [resolvable:$true] %s1278
          %1281 = dma.vmem_to_hbm [thread:$0]  %s1277, 128, %s1279, %s1258
        $region80: #{tpu_custom_call.1} parent=55 // pred_fallthru
          _
        // Predicated region
        $region81: #{tpu_custom_call.1} parent=55 // pred_check
          %p1282 = pneg %p296
        $region82: #{tpu_custom_call.1} parent=55 // pred_check_branch
          %1284 = sbr.rel (%p1282) target = $region84
        $region83: #{tpu_custom_call.1} parent=55 // pred_region
          %1286 = vsyncadd %s1263, 0
          %s1287 = scalar_lea.hbm %s10, %s38
          %s1289 = sshll.u32 %s1265, 4
          %s1290 = int_to_ptr.vmem [resolvable:$true] %s1289
          %s1291 = sshll.u32 %s1287, 4
          %s1292 = int_to_ptr.hbm [resolvable:$true] %s1291
          %1294 = dma.vmem_to_hbm [thread:$0]  %s1290, 16, %s1292, %s1263
        $region84: #{tpu_custom_call.1} parent=55 // pred_fallthru
          _
      $region56: #{tpu_custom_call.1} parent=5 // pred_fallthru
        _
      %p1295 = scmp.le.s32.totalorder 2, %s28
      // Predicated region
      $region85: #{tpu_custom_call.1} parent=5 // pred_check
        %p1296 = pneg %p1295
      $region86: #{tpu_custom_call.1} parent=5 // pred_check_branch
        %1298 = sbr.rel (%p1296) target = $region88
      $region87: #{tpu_custom_call.1} parent=5 // pred_region
        %s1299 = ssub.s32 %s28, 2
        // Predicated region
        $region89: #{tpu_custom_call.1} parent=87 // pred_check
          %p1300 = pneg %p276
        $region90: #{tpu_custom_call.1} parent=87 // pred_check_branch
          %1302 = sbr.rel (%p1300) target = $region92
        $region91: #{tpu_custom_call.1} parent=87 // pred_region
          %s1303 = sand.u32 %s261, 1
          %s1304 = scalar_lea.sflag [#allocation7], %s1303
          %s1305 = sand.u32 %s261, 1
          %s1306 = smul.addr %s1305, 8
          %s1307 = scalar_lea.vmem [#allocation8], %s1306
          %1309 = dma.done %s1304, 128
        $region92: #{tpu_custom_call.1} parent=87 // pred_fallthru
          _
        // Predicated region
        $region93: #{tpu_custom_call.1} parent=87 // pred_check
          %p1310 = pneg %p302
        $region94: #{tpu_custom_call.1} parent=87 // pred_check_branch
          %1312 = sbr.rel (%p1310) target = $region96
        $region95: #{tpu_custom_call.1} parent=87 // pred_region
          %s1313 = sand.u32 %s287, 1
          %s1314 = scalar_lea.sflag [#allocation10], %s1313
          %s1315 = sand.u32 %s287, 1
          %s1316 = scalar_lea.vmem [#allocation9], %s1315
          %1318 = dma.done %s1314, 16
        $region96: #{tpu_custom_call.1} parent=87 // pred_fallthru
          _
      $region88: #{tpu_custom_call.1} parent=5 // pred_fallthru
        _
    $region6: #{tpu_custom_call.1} parent=1 // loop_footer
      %s32 = sadd.s32 1, %s28
    $region7: #{tpu_custom_call.1} parent=1 // loop_footer_branch
      %27 = sbr.rel target = $region3
    $region8: #{tpu_custom_call.1} parent=1 // loop_exit
      _
    %1319 = vsyncpa [#allocation6], 1
    %s1320 = scalar_lea.sflag [#allocation6], 1
    %1321 = vsyncpa %s1320, 1
    %1322 = vsyncpa [#allocation7], 1
    %s1323 = scalar_lea.sflag [#allocation7], 1
    %1324 = vsyncpa %s1323, 1
    %1325 = vsyncpa [#allocation10], 1
    %s1326 = scalar_lea.sflag [#allocation10], 1
    %1327 = vsyncpa %s1326, 1

</llo_original>
